<compile_context>
chip_gen: v6e
topology: v6e:2x2x1
jax: 0.10.0
libtpu: 0.0.40
codegen_flags: <defaults>
</compile_context>

<pallas_src>
import functools

import jax
import jax.numpy as jnp
from jax.experimental import pallas as pl
from jax.experimental.pallas import tpu as pltpu


# ----------------------------------------------------------------------------
# Pallas kernel: one grid step processes Bt batch elements.
# ----------------------------------------------------------------------------
def att_loc_kernel(
    enc_ref,       # (Bt, T, E)  encoder states
    shifted_ref,   # (Bt, T, K)  K shifted copies of att_prev (conv taps)
    dz_ref,        # (Bt, D)     decoder state
    len_ref,       # (Bt, 1)     int32 valid lengths
    wencT_ref,     # (E, A)
    benc_ref,      # (1, A)
    wdecT_ref,     # (D, A)
    wconvT_ref,    # (K, C)
    wattT_ref,     # (C, A)
    wg_ref,        # (1, A)
    bg_ref,        # (1, 1)
    ctx_ref,       # out: (Bt, 1, E)
    w_ref,         # out: (Bt, T)   lane-dense attention weights
    *,
    scaling: float,
):
    Bt, T, E = enc_ref.shape
    K = shifted_ref.shape[2]
    A = wencT_ref.shape[1]

    enc = enc_ref[...]                                             # (Bt, T, E)

    # ---- encoder projection: one (Bt*T, E) @ (E, A) MXU matmul --------------
    pre_enc = (
        jnp.dot(enc.reshape(Bt * T, E), wencT_ref[...],
                preferred_element_type=jnp.float32)
        + benc_ref[...]
    )                                                              # (Bt*T, A)

    # ---- location conv (1xK along T) + mlp_att as two MXU matmuls -----------
    conv = jnp.dot(shifted_ref[...].reshape(Bt * T, K), wconvT_ref[...],
                   preferred_element_type=jnp.float32)             # (Bt*T, C)
    att_c = jnp.dot(conv, wattT_ref[...],
                    preferred_element_type=jnp.float32)            # (Bt*T, A)

    # ---- decoder projection ---------------------------------------------------
    dec_proj = jnp.dot(dz_ref[...], wdecT_ref[...],
                       preferred_element_type=jnp.float32)         # (Bt, A)

    z = jnp.tanh(pre_enc.reshape(Bt, T, A) + att_c.reshape(Bt, T, A)
                 + dec_proj[:, None, :])                           # (Bt, T, A)

    # ---- score: reduce over A -> (Bt, T), T lane-dense ------------------------
    e = jnp.sum(z * wg_ref[...].reshape(1, 1, A), axis=-1) + bg_ref[...]  # (Bt, T)

    # ---- length masking (finite large-negative: no NaN on fully-masked rows) --
    t_idx = jax.lax.broadcasted_iota(jnp.int32, (Bt, T), 1)
    e = jnp.where(t_idx >= len_ref[...], jnp.float32(-1e30), e)

    # ---- scaled softmax over T (lane reduces), EUP reciprocal -----------------
    e = scaling * e
    m = jnp.max(e, axis=-1, keepdims=True)                         # (Bt, 1)
    p = jnp.exp(e - m)                                             # (Bt, T)
    s = jnp.sum(p, axis=-1, keepdims=True)                         # (Bt, 1)
    inv_s = pl.reciprocal(s, approx=True)                          # EUP slot
    inv_s = inv_s * (2.0 - s * inv_s)                              # 1 NR step -> ~f32 exact
    w = p * inv_s                                                  # (Bt, T)
    w_ref[...] = w

    # ---- attention-weighted encoder state: (Bt,1,T) @ (Bt,T,E) on the MXU -----
    ctx = jnp.einsum("bqt,bte->bqe", w[:, None, :], enc,
                     preferred_element_type=jnp.float32)           # (Bt, 1, E)
    ctx_ref[...] = ctx


# ----------------------------------------------------------------------------
# Wrapper (glue: None-branches, shifted conv taps, weight transposes, tiling)
# ----------------------------------------------------------------------------
def att_loc_forward(enc_hs_pad, enc_hs_len, dec_z, att_prev, params,
                    scaling=2.0, batch_tile=8):
    W_enc, b_enc, W_dec, W_conv, W_att, W_g, b_g = params
    B, T, E = enc_hs_pad.shape
    A, D = W_dec.shape
    C, K = W_conv.shape
    filts = (K - 1) // 2

    enc_hs_pad = enc_hs_pad.astype(jnp.float32)
    lens = enc_hs_len.astype(jnp.int32)

    # dec_z is None -> zeros (PyTorch None branch)
    if dec_z is None:
        dec_z = jnp.zeros((B, D), jnp.float32)
    dec_z = dec_z.reshape(B, D).astype(jnp.float32)

    # att_prev is None -> uniform over valid frames (PyTorch None branch)
    if att_prev is None:
        valid = (jnp.arange(T)[None, :] < lens[:, None]).astype(jnp.float32)
        att_prev = valid / lens.astype(jnp.float32)[:, None]
    att_prev = att_prev.astype(jnp.float32)

    # K shifted copies of att_prev so the 1xK conv becomes a (T,K)@(K,C) matmul.
    ap_pad = jnp.pad(att_prev, ((0, 0), (filts, filts)))
    shifted = jnp.stack([ap_pad[:, k:k + T] for k in range(K)], axis=2)   # (B, T, K)

    # weights transposed once so every in-kernel dot is a plain A @ B
    # (could also be cast to bf16 to halve HBM traffic; kept f32 for exact parity).
    wencT = W_enc.T.astype(jnp.float32)             # (E, A)
    benc2 = b_enc.reshape(1, A).astype(jnp.float32)
    wdecT = W_dec.T.astype(jnp.float32)             # (D, A)
    wconvT = W_conv.T.astype(jnp.float32)           # (K, C)
    wattT = W_att.T.astype(jnp.float32)             # (C, A)
    wg2 = W_g.reshape(1, A).astype(jnp.float32)
    bg2 = b_g.reshape(1, 1).astype(jnp.float32)
    lens2 = lens.reshape(B, 1)

    # batch tiling: Bt rows per grid step; Bt is the full batch (small B) or a
    # multiple of 8 (sublane-aligned), with the batch padded to a multiple of Bt.
    if B <= batch_tile:
        Bt, Bp = B, B
    else:
        assert batch_tile % 8 == 0
        Bt = batch_tile
        Bp = ((B + Bt - 1) // Bt) * Bt

    def pad_b(x):
        if Bp == B:
            return x
        pad = [(0, Bp - B)] + [(0, 0)] * (x.ndim - 1)
        return jnp.pad(x, pad)

    enc_p, shifted_p, dz_p, lens_p = (pad_b(enc_hs_pad), pad_b(shifted),
                                      pad_b(dec_z), pad_b(lens2))

    grid_spec = pltpu.PrefetchScalarGridSpec(
        num_scalar_prefetch=0,
        grid=(Bp // Bt,),
        in_specs=[
            pl.BlockSpec((Bt, T, E), lambda i: (i, 0, 0)),
            pl.BlockSpec((Bt, T, K), lambda i: (i, 0, 0)),
            pl.BlockSpec((Bt, D), lambda i: (i, 0)),
            pl.BlockSpec((Bt, 1), lambda i: (i, 0)),
            pl.BlockSpec((E, A), lambda i: (0, 0)),
            pl.BlockSpec((1, A), lambda i: (0, 0)),
            pl.BlockSpec((D, A), lambda i: (0, 0)),
            pl.BlockSpec((K, C), lambda i: (0, 0)),
            pl.BlockSpec((C, A), lambda i: (0, 0)),
            pl.BlockSpec((1, A), lambda i: (0, 0)),
            pl.BlockSpec((1, 1), lambda i: (0, 0)),
        ],
        out_specs=[
            pl.BlockSpec((Bt, 1, E), lambda i: (i, 0, 0)),
            pl.BlockSpec((Bt, T), lambda i: (i, 0)),
        ],
    )

    out_shape = (
        jax.ShapeDtypeStruct((Bp, 1, E), jnp.float32),
        jax.ShapeDtypeStruct((Bp, T), jnp.float32),
    )

    ctx, w = pl.pallas_call(
        functools.partial(att_loc_kernel, scaling=float(scaling)),
        out_shape=out_shape,
        grid_spec=grid_spec,
        compiler_params=pltpu.CompilerParams(
            dimension_semantics=("parallel",),        # batch steps are independent
            vmem_limit_bytes=32 * 1024 * 1024,        # fits v5e/v6e/v7x scoped VMEM
        ),
    )(enc_p, shifted_p, dz_p, lens_p,
      wencT, benc2, wdecT, wconvT, wattT, wg2, bg2)

    # match PyTorch return shapes: (B, E), (B, T)
    return ctx[:B, 0, :], w[:B, :]


# ----------------------------------------------------------------------------
# Pure-JAX reference (mirrors the PyTorch forward exactly)
# ----------------------------------------------------------------------------
def att_loc_reference(enc_hs_pad, enc_hs_len, dec_z, att_prev, params, scaling=2.0):
    W_enc, b_enc, W_dec, W_conv, W_att, W_g, b_g = params
    B, T, E = enc_hs_pad.shape
    C, K = W_conv.shape
    filts = (K - 1) // 2

    pre_enc = enc_hs_pad @ W_enc.T + b_enc                         # (B, T, A)
    dec_proj = dec_z @ W_dec.T                                     # (B, A)

    ap_pad = jnp.pad(att_prev, ((0, 0), (filts, filts)))
    shifted = jnp.stack([ap_pad[:, k:k + T] for k in range(K)], axis=2)   # (B, T, K)
    conv = jnp.einsum("btk,ck->btc", shifted, W_conv)              # (B, T, C)
    att_c = conv @ W_att.T                                         # (B, T, A)

    z = jnp.tanh(att_c + pre_enc + dec_proj[:, None, :])
    e = jnp.einsum("bta,a->bt", z, W_g[0]) + b_g[0]                # (B, T)
    mask = jnp.arange(T)[None, :] >= enc_hs_len[:, None]
    e = jnp.where(mask, -jnp.inf, e)
    w = jax.nn.softmax(scaling * e, axis=1)
    c = jnp.einsum("bt,bte->be", w, enc_hs_pad)
    return c, w


# ----------------------------------------------------------------------------
if __name__ == "__main__":
    # module hyper-parameters (small, consistent with the PyTorch __init__)
    B, T = 16, 8
    eprojs, dunits, att_dim = 16, 32, 16
    aconv_chans, aconv_filts = 4, 3
    K = 2 * aconv_filts + 1
    scaling = 2.0

    key = jax.random.PRNGKey(0)
    keys = jax.random.split(key, 10)

    # deterministic synthetic parameters (PyTorch weight orientations)
    W_enc = 0.1 * jax.random.normal(keys[0], (att_dim, eprojs), jnp.float32)
    b_enc = 0.1 * jax.random.normal(keys[1], (att_dim,), jnp.float32)
    W_dec = 0.1 * jax.random.normal(keys[2], (att_dim, dunits), jnp.float32)
    W_conv = 0.1 * jax.random.normal(keys[3], (aconv_chans, K), jnp.float32)
    W_att = 0.1 * jax.random.normal(keys[4], (att_dim, aconv_chans), jnp.float32)
    W_g = 0.1 * jax.random.normal(keys[5], (1, att_dim), jnp.float32)
    b_g = 0.1 * jax.random.normal(keys[6], (1,), jnp.float32)
    params = (W_enc, b_enc, W_dec, W_conv, W_att, W_g, b_g)

    # inputs
    enc_hs_pad = jax.random.normal(keys[7], (B, T, eprojs), jnp.float32)
    enc_hs_len = (3 + (jnp.arange(B) % 6)).astype(jnp.int32)        # lengths in [3, 8]
    dec_z = jax.random.normal(keys[8], (B, dunits), jnp.float32)

    # att_prev as in the PyTorch None branch: uniform weights over valid frames
    valid = (jnp.arange(T)[None, :] < enc_hs_len[:, None]).astype(jnp.float32)
    att_prev = valid / enc_hs_len.astype(jnp.float32)[:, None]

    # Pallas kernel
    c_out, w_out = att_loc_forward(enc_hs_pad, enc_hs_len, dec_z, att_prev,
                                   params, scaling=scaling, batch_tile=8)
    jax.block_until_ready((c_out, w_out))

    # reference check
    c_ref, w_ref = att_loc_reference(enc_hs_pad, enc_hs_len, dec_z, att_prev,
                                     params, scaling=scaling)

    assert jnp.allclose(c_out, c_ref, atol=2e-3, rtol=2e-3)
    assert jnp.allclose(w_out, w_ref, atol=2e-3, rtol=2e-3)

    print("KERNEL_OK")
</pallas_src>

<mosaic_0001>
module attributes {stable_mosaic.version = 11 : i64} {
  func.func @att_loc_kernel(%arg0: i32, %arg1: memref<8x8x16xf32, #tpu.memory_space<vmem>>, %arg2: memref<8x8x7xf32, #tpu.memory_space<vmem>>, %arg3: memref<8x32xf32, #tpu.memory_space<vmem>>, %arg4: memref<8x1xi32, #tpu.memory_space<vmem>>, %arg5: memref<16x16xf32, #tpu.memory_space<vmem>>, %arg6: memref<1x16xf32, #tpu.memory_space<vmem>>, %arg7: memref<32x16xf32, #tpu.memory_space<vmem>>, %arg8: memref<7x4xf32, #tpu.memory_space<vmem>>, %arg9: memref<4x16xf32, #tpu.memory_space<vmem>>, %arg10: memref<1x16xf32, #tpu.memory_space<vmem>>, %arg11: memref<1x1xf32, #tpu.memory_space<vmem>>, %arg12: memref<8x1x16xf32, #tpu.memory_space<vmem>>, %arg13: memref<8x8xf32, #tpu.memory_space<vmem>>) attributes {dimension_semantics = [#tpu.dimension_semantics<parallel>], iteration_bounds = array<i64: 2>, scalar_prefetch = 0 : i64, scratch_operands = 0 : i64, tpu.core_type = #tpu.core_type<tc>, window_params = [{transform_indices = @transform_0, window_bounds = array<i64: 8, 8, 16>}, {transform_indices = @transform_1, window_bounds = array<i64: 8, 8, 7>}, {transform_indices = @transform_2, window_bounds = array<i64: 8, 32>}, {transform_indices = @transform_3, window_bounds = array<i64: 8, 1>}, {pipeline_mode = #tpu.pipeline_mode<synchronous>, transform_indices = @transform_4, window_bounds = array<i64: 16, 16>}, {pipeline_mode = #tpu.pipeline_mode<synchronous>, transform_indices = @transform_5, window_bounds = array<i64: 1, 16>}, {pipeline_mode = #tpu.pipeline_mode<synchronous>, transform_indices = @transform_6, window_bounds = array<i64: 32, 16>}, {pipeline_mode = #tpu.pipeline_mode<synchronous>, transform_indices = @transform_7, window_bounds = array<i64: 7, 4>}, {pipeline_mode = #tpu.pipeline_mode<synchronous>, transform_indices = @transform_8, window_bounds = array<i64: 4, 16>}, {pipeline_mode = #tpu.pipeline_mode<synchronous>, transform_indices = @transform_9, window_bounds = array<i64: 1, 16>}, {pipeline_mode = #tpu.pipeline_mode<synchronous>, transform_indices = @transform_10, window_bounds = array<i64: 1, 1>}, {transform_indices = @transform_11, window_bounds = array<i64: 8, 1, 16>}, {transform_indices = @transform_12, window_bounds = array<i64: 8, 8>}]} {
    %c0 = arith.constant 0 : index
    %c0_0 = arith.constant 0 : index
    %c0_1 = arith.constant 0 : index
    %0 = vector.load %arg1[%c0, %c0_0, %c0_1] : memref<8x8x16xf32, #tpu.memory_space<vmem>>, vector<8x8x16xf32>
    %1 = vector.shape_cast %0 : vector<8x8x16xf32> to vector<64x16xf32>
    %c0_2 = arith.constant 0 : index
    %c0_3 = arith.constant 0 : index
    %2 = vector.load %arg5[%c0_2, %c0_3] : memref<16x16xf32, #tpu.memory_space<vmem>>, vector<16x16xf32>
    %cst = arith.constant dense<0.000000e+00> : vector<64x16xf32>
    %3 = tpu.matmul %1, %2, %cst {dimension_numbers = #tpu.dot_dimension_numbers<[1], [0], [0], [1], [0, 0, 1, 1], [], []>} : vector<64x16xf32>, vector<16x16xf32>, vector<64x16xf32> -> vector<64x16xf32>
    %c0_4 = arith.constant 0 : index
    %c0_5 = arith.constant 0 : index
    %4 = vector.load %arg6[%c0_4, %c0_5] : memref<1x16xf32, #tpu.memory_space<vmem>>, vector<1x16xf32>
    %5 = vector.broadcast %4 : vector<1x16xf32> to vector<64x16xf32>
    %6 = arith.addf %3, %5 : vector<64x16xf32>
    %c0_6 = arith.constant 0 : index
    %c0_7 = arith.constant 0 : index
    %c0_8 = arith.constant 0 : index
    %7 = vector.load %arg2[%c0_6, %c0_7, %c0_8] : memref<8x8x7xf32, #tpu.memory_space<vmem>>, vector<8x8x7xf32>
    %8 = vector.shape_cast %7 : vector<8x8x7xf32> to vector<64x7xf32>
    %c0_9 = arith.constant 0 : index
    %c0_10 = arith.constant 0 : index
    %9 = vector.load %arg8[%c0_9, %c0_10] : memref<7x4xf32, #tpu.memory_space<vmem>>, vector<7x4xf32>
    %cst_11 = arith.constant dense<0.000000e+00> : vector<64x4xf32>
    %10 = tpu.matmul %8, %9, %cst_11 {dimension_numbers = #tpu.dot_dimension_numbers<[1], [0], [0], [1], [0, 0, 1, 1], [], []>} : vector<64x7xf32>, vector<7x4xf32>, vector<64x4xf32> -> vector<64x4xf32>
    %c0_12 = arith.constant 0 : index
    %c0_13 = arith.constant 0 : index
    %11 = vector.load %arg9[%c0_12, %c0_13] : memref<4x16xf32, #tpu.memory_space<vmem>>, vector<4x16xf32>
    %cst_14 = arith.constant dense<0.000000e+00> : vector<64x16xf32>
    %12 = tpu.matmul %10, %11, %cst_14 {dimension_numbers = #tpu.dot_dimension_numbers<[1], [0], [0], [1], [0, 0, 1, 1], [], []>} : vector<64x4xf32>, vector<4x16xf32>, vector<64x16xf32> -> vector<64x16xf32>
    %c0_15 = arith.constant 0 : index
    %c0_16 = arith.constant 0 : index
    %13 = vector.load %arg3[%c0_15, %c0_16] : memref<8x32xf32, #tpu.memory_space<vmem>>, vector<8x32xf32>
    %c0_17 = arith.constant 0 : index
    %c0_18 = arith.constant 0 : index
    %14 = vector.load %arg7[%c0_17, %c0_18] : memref<32x16xf32, #tpu.memory_space<vmem>>, vector<32x16xf32>
    %cst_19 = arith.constant dense<0.000000e+00> : vector<8x16xf32>
    %15 = tpu.matmul %13, %14, %cst_19 {dimension_numbers = #tpu.dot_dimension_numbers<[1], [0], [0], [1], [0, 0, 1, 1], [], []>} : vector<8x32xf32>, vector<32x16xf32>, vector<8x16xf32> -> vector<8x16xf32>
    %16 = vector.shape_cast %6 : vector<64x16xf32> to vector<8x8x16xf32>
    %17 = vector.shape_cast %12 : vector<64x16xf32> to vector<8x8x16xf32>
    %18 = arith.addf %16, %17 : vector<8x8x16xf32>
    %19 = vector.shape_cast %15 : vector<8x16xf32> to vector<8x1x16xf32>
    %20 = vector.broadcast %19 : vector<8x1x16xf32> to vector<8x8x16xf32>
    %21 = arith.addf %18, %20 : vector<8x8x16xf32>
    %22 = math.tanh %21 : vector<8x8x16xf32>
    %c0_20 = arith.constant 0 : index
    %c0_21 = arith.constant 0 : index
    %23 = vector.load %arg10[%c0_20, %c0_21] : memref<1x16xf32, #tpu.memory_space<vmem>>, vector<1x16xf32>
    %24 = vector.shape_cast %23 : vector<1x16xf32> to vector<1x1x16xf32>
    %25 = vector.broadcast %24 : vector<1x1x16xf32> to vector<8x8x16xf32>
    %26 = arith.mulf %22, %25 : vector<8x8x16xf32>
    %cst_22 = arith.constant dense<0.000000e+00> : vector<8x8xf32>
    %27 = vector.multi_reduction <add>, %26, %cst_22 [2] : vector<8x8x16xf32> to vector<8x8xf32>
    %c0_23 = arith.constant 0 : index
    %c0_24 = arith.constant 0 : index
    %28 = vector.load %arg11[%c0_23, %c0_24] : memref<1x1xf32, #tpu.memory_space<vmem>>, vector<1x1xf32>
    %29 = vector.broadcast %28 : vector<1x1xf32> to vector<8x8xf32>
    %30 = arith.addf %27, %29 : vector<8x8xf32>
    %31 = tpu.iota {dimensions = array<i32: 1>} : vector<8x8xi32>
    %c0_25 = arith.constant 0 : index
    %c0_26 = arith.constant 0 : index
    %32 = vector.load %arg4[%c0_25, %c0_26] : memref<8x1xi32, #tpu.memory_space<vmem>>, vector<8x1xi32>
    %33 = vector.broadcast %32 : vector<8x1xi32> to vector<8x8xi32>
    %34 = arith.cmpi sge, %31, %33 : vector<8x8xi32>
    %cst_27 = arith.constant -1.000000e+30 : f32
    %35 = vector.broadcast %cst_27 : f32 to vector<8x8xf32>
    %36 = arith.select %34, %35, %30 : vector<8x8xi1>, vector<8x8xf32>
    %cst_28 = arith.constant 2.000000e+00 : f32
    %37 = vector.broadcast %cst_28 : f32 to vector<8x8xf32>
    %38 = arith.mulf %37, %36 : vector<8x8xf32>
    %cst_29 = arith.constant dense<0xFF800000> : vector<8xf32>
    %39 = vector.multi_reduction <maximumf>, %38, %cst_29 [1] : vector<8x8xf32> to vector<8xf32>
    %40 = vector.shape_cast %39 : vector<8xf32> to vector<8x1xf32>
    %41 = vector.broadcast %40 : vector<8x1xf32> to vector<8x8xf32>
    %42 = arith.subf %38, %41 : vector<8x8xf32>
    %43 = math.exp %42 : vector<8x8xf32>
    %cst_30 = arith.constant dense<0.000000e+00> : vector<8xf32>
    %44 = vector.multi_reduction <add>, %43, %cst_30 [1] : vector<8x8xf32> to vector<8xf32>
    %45 = vector.shape_cast %44 : vector<8xf32> to vector<8x1xf32>
    %46 = tpu.reciprocal %45 {approx = true} : vector<8x1xf32> -> vector<8x1xf32>
    %47 = arith.mulf %45, %46 : vector<8x1xf32>
    %cst_31 = arith.constant 2.000000e+00 : f32
    %48 = vector.broadcast %cst_31 : f32 to vector<8x1xf32>
    %49 = arith.subf %48, %47 : vector<8x1xf32>
    %50 = arith.mulf %46, %49 : vector<8x1xf32>
    %51 = vector.broadcast %50 : vector<8x1xf32> to vector<8x8xf32>
    %52 = arith.mulf %43, %51 : vector<8x8xf32>
    %c0_32 = arith.constant 0 : index
    %c0_33 = arith.constant 0 : index
    %53 = vector.load %arg13[%c0_32, %c0_33] : memref<8x8xf32, #tpu.memory_space<vmem>>, vector<8x8xf32>
    tpu.vector_store %arg13[%c0_32, %c0_33], %52 {strides = array<i32>} : memref<8x8xf32, #tpu.memory_space<vmem>>, vector<8x8xf32>,
    %54 = vector.shape_cast %52 : vector<8x8xf32> to vector<8x1x8xf32>
    "tpu.trace_start"() <{level = 10 : i32, message = "bqt,bte->bqe"}> : () -> ()
    %cst_34 = arith.constant dense<0.000000e+00> : vector<8x1x16xf32>
    %55 = tpu.matmul %54, %0, %cst_34 {dimension_numbers = #tpu.dot_dimension_numbers<[2], [1], [1], [2], [0, 0, 0, 1, 1, 2], [0], [0]>} : vector<8x1x8xf32>, vector<8x8x16xf32>, vector<8x1x16xf32> -> vector<8x1x16xf32>
    "tpu.trace_stop"() : () -> ()
    %c0_35 = arith.constant 0 : index
    %c0_36 = arith.constant 0 : index
    %c0_37 = arith.constant 0 : index
    %56 = vector.load %arg12[%c0_35, %c0_36, %c0_37] : memref<8x1x16xf32, #tpu.memory_space<vmem>>, vector<8x1x16xf32>
    tpu.vector_store %arg12[%c0_35, %c0_36, %c0_37], %55 {strides = array<i32>} : memref<8x1x16xf32, #tpu.memory_space<vmem>>, vector<8x1x16xf32>,
    return
  }
  func.func @transform_0(%arg0: i32) -> (i32, i32, i32) {
    %c0_i32 = arith.constant 0 : i32
    %c0_i32_0 = arith.constant 0 : i32
    %c0_i32_1 = arith.constant 0 : i32
    return %arg0, %c0_i32, %c0_i32_0 : i32, i32, i32
  }
  func.func @transform_1(%arg0: i32) -> (i32, i32, i32) {
    %c0_i32 = arith.constant 0 : i32
    %c0_i32_0 = arith.constant 0 : i32
    %c0_i32_1 = arith.constant 0 : i32
    return %arg0, %c0_i32, %c0_i32_0 : i32, i32, i32
  }
  func.func @transform_2(%arg0: i32) -> (i32, i32) {
    %c0_i32 = arith.constant 0 : i32
    %c0_i32_0 = arith.constant 0 : i32
    return %arg0, %c0_i32 : i32, i32
  }
  func.func @transform_3(%arg0: i32) -> (i32, i32) {
    %c0_i32 = arith.constant 0 : i32
    %c0_i32_0 = arith.constant 0 : i32
    return %arg0, %c0_i32 : i32, i32
  }
  func.func @transform_4(%arg0: i32) -> (i32, i32) {
    %c0_i32 = arith.constant 0 : i32
    %c0_i32_0 = arith.constant 0 : i32
    %c0_i32_1 = arith.constant 0 : i32
    return %c0_i32, %c0_i32_0 : i32, i32
  }
  func.func @transform_5(%arg0: i32) -> (i32, i32) {
    %c0_i32 = arith.constant 0 : i32
    %c0_i32_0 = arith.constant 0 : i32
    %c0_i32_1 = arith.constant 0 : i32
    return %c0_i32, %c0_i32_0 : i32, i32
  }
  func.func @transform_6(%arg0: i32) -> (i32, i32) {
    %c0_i32 = arith.constant 0 : i32
    %c0_i32_0 = arith.constant 0 : i32
    %c0_i32_1 = arith.constant 0 : i32
    return %c0_i32, %c0_i32_0 : i32, i32
  }
  func.func @transform_7(%arg0: i32) -> (i32, i32) {
    %c0_i32 = arith.constant 0 : i32
    %c0_i32_0 = arith.constant 0 : i32
    %c0_i32_1 = arith.constant 0 : i32
    return %c0_i32, %c0_i32_0 : i32, i32
  }
  func.func @transform_8(%arg0: i32) -> (i32, i32) {
    %c0_i32 = arith.constant 0 : i32
    %c0_i32_0 = arith.constant 0 : i32
    %c0_i32_1 = arith.constant 0 : i32
    return %c0_i32, %c0_i32_0 : i32, i32
  }
  func.func @transform_9(%arg0: i32) -> (i32, i32) {
    %c0_i32 = arith.constant 0 : i32
    %c0_i32_0 = arith.constant 0 : i32
    %c0_i32_1 = arith.constant 0 : i32
    return %c0_i32, %c0_i32_0 : i32, i32
  }
  func.func @transform_10(%arg0: i32) -> (i32, i32) {
    %c0_i32 = arith.constant 0 : i32
    %c0_i32_0 = arith.constant 0 : i32
    %c0_i32_1 = arith.constant 0 : i32
    return %c0_i32, %c0_i32_0 : i32, i32
  }
  func.func @transform_11(%arg0: i32) -> (i32, i32, i32) {
    %c0_i32 = arith.constant 0 : i32
    %c0_i32_0 = arith.constant 0 : i32
    %c0_i32_1 = arith.constant 0 : i32
    return %arg0, %c0_i32, %c0_i32_0 : i32, i32, i32
  }
  func.func @transform_12(%arg0: i32) -> (i32, i32) {
    %c0_i32 = arith.constant 0 : i32
    %c0_i32_0 = arith.constant 0 : i32
    return %arg0, %c0_i32 : i32, i32
  }
}

</mosaic_0001>

<llo_original>
// kernel: tpu_custom_call.1
$region0: #{tpu_custom_call.1}
  #allocation0 [shape = 'u32[]', space=smem, size = 0x4, offset = 0x4, fixed_abs, tag = 'smem constant byte address 0x4 - core index']
  #allocation1 [shape = 'u32[144,128]{1,0:T(1,128)}', space=vmem, size = 0x12000, scoped, tag = 'internal scratch']
  #allocation2 [shape = 'f32[1,1]{1,0:T(1,128)S(1)}', space=vmem, size = 0x200, scoped, tag = 'scoped memory for tpu_custom_call.1']
  %s0 = inlined_call_operand.vmem [shape: f32[16,8,16], index: 0, kind: input, shape index: {}]
  %s1 = inlined_call_operand.vmem [shape: f32[16,8,7], index: 1, kind: input, shape index: {}]
  %s2 = inlined_call_operand.vmem [shape: f32[16,32], index: 2, kind: input, shape index: {}]
  %s3 = inlined_call_operand.vmem [shape: s32[16,1], index: 3, kind: input, shape index: {}]
  %s4 = inlined_call_operand.vmem [shape: f32[16,16], index: 4, kind: input, shape index: {}]
  %s5 = inlined_call_operand.vmem [shape: f32[1,16], index: 5, kind: input, shape index: {}]
  %s6 = inlined_call_operand.vmem [shape: f32[32,16], index: 6, kind: input, shape index: {}]
  %s7 = inlined_call_operand.vmem [shape: f32[7,4], index: 7, kind: input, shape index: {}]
  %s8 = inlined_call_operand.vmem [shape: f32[4,16], index: 8, kind: input, shape index: {}]
  %s9 = inlined_call_operand.vmem [shape: f32[1,16], index: 9, kind: input, shape index: {}]
  %s10 = inlined_call_operand.<no memory space> [shape: f32[1,1], index: 10, kind: input, shape index: {}]
  %s11 = inlined_call_operand.hbm [shape: f32[16,1,16], index: 11, kind: output, shape index: {0}]
  %s12 = inlined_call_operand.vmem [shape: f32[16,8], index: 12, kind: output, shape index: {1}]
  %13 = xla_tuple %s11, %s12
  %s14 = sld [smem:[#allocation0]]
  $region85: #{tpu_custom_call.1} parent=0
    _
  %s16 = ssub.s32 1, %s14
  %s17 = scalar_select 0, %s16, %s14
  %v18 = vstv %s10
  %19 = vst [vmem:[#allocation2] sm:$0x1] %v18
  $region1: #{tpu_custom_call.1} parent=0
    #allocation3 [shape = 'u8[8192]{0}', space=vmem, size = 0x2000, scoped, tag = 'output window, operand 0']
    #allocation4 [shape = 's32[2]{0}', space=sflag, size = 0x8, scoped, tag = 'scoped memory for tpu_custom_call.1']
    %20 = vsyncpa [#allocation4], 0
    %s21 = scalar_lea.sflag [#allocation4], 1
    %22 = vsyncpa %s21, 0
    loop: start=0, step=1, limit=4
    $region2: #{tpu_custom_call.1} parent=1 // loop_pre_header
      _
    $region3: #{tpu_custom_call.1} parent=1 // loop_header
      %s24 = sphi 0, %s28
      %p25 = scmp.ge.s32.totalorder %s24, 4
      %s34 = sphi 0, %s36
      %s37 = sphi 0, %s34
      %s38 = sphi 0, %s37
      %s54 = sphi 0, %s38
      %s60 = sphi 0, %s62
      %s63 = sphi 0, %s60
      %s64 = sphi 0, %s63
      %s80 = sphi 0, %s64
      %s86 = sphi 0, %s88
      %s89 = sphi 0, %s86
      %s90 = sphi 0, %s89
      %s106 = sphi 0, %s90
      %s112 = sphi 0, %s114
      %s115 = sphi 0, %s112
      %s116 = sphi 0, %s115
      %s132 = sphi 0, %s116
      %s136 = sphi 0, %s136
      %s138 = sphi 0, %s136
      %s139 = sphi 0, %s138
      %s153 = sphi 0, %s139
      %s157 = sphi 0, %s157
      %s159 = sphi 0, %s157
      %s160 = sphi 0, %s159
      %s174 = sphi 0, %s160
      %s178 = sphi 0, %s178
      %s180 = sphi 0, %s178
      %s181 = sphi 0, %s180
      %s195 = sphi 0, %s181
      %s199 = sphi 0, %s199
      %s201 = sphi 0, %s199
      %s202 = sphi 0, %s201
      %s216 = sphi 0, %s202
      %s220 = sphi 0, %s220
      %s222 = sphi 0, %s220
      %s223 = sphi 0, %s222
      %s237 = sphi 0, %s223
      %s241 = sphi 0, %s241
      %s243 = sphi 0, %s241
      %s244 = sphi 0, %s243
      %s258 = sphi 0, %s244
      %s262 = sphi 0, %s262
      %s264 = sphi 0, %s262
      %s265 = sphi 0, %s264
      %s279 = sphi 0, %s265
      %s285 = sphi 0, %s287
      %s288 = sphi 0, %s285
      %s289 = sphi 0, %s288
      %s305 = sphi 0, %s289
      %s311 = sphi 0, %s313
      %s314 = sphi 0, %s311
      %s315 = sphi 0, %s314
      %s331 = sphi 0, %s315
    $region4: #{tpu_custom_call.1} parent=1 // loop_header_branch
      %27 = sbr.rel (%p25) target = $region8
    $region5: #{tpu_custom_call.1} parent=1 // loop_body
      %s29 = ssub.s32 %s24, 1
      %s30 = ssub.s32 %s24, 2
      %s31 = sadd.s32 %s24, 1
      %s32 = ssub.s32 %s24, %s31
      %p33 = scmp.eq.s32.totalorder %s32, 0
      %s35 = sadd.s32 %s34, 1
      %s36 = scalar_select %p33, %s34, %s35
      %p39 = pneg %p33
      %p40 = scmp.eq.s32.totalorder %s24, 1
      %p41 = por %p39, %p40
      %p42 = scmp.ne.s32.totalorder %s34, %s37
      %p43 = scmp.eq.s32.totalorder %s24, 0
      %p44 = por %p42, %p43
      %p45 = scmp.ne.s32.totalorder %s34, %s37
      %p46 = scmp.eq.s32.totalorder %s29, 1
      %p47 = por %p45, %p46
      %p48 = scmp.ne.s32.totalorder %s37, %s38
      %p49 = scmp.eq.s32.totalorder %s29, 0
      %p50 = por %p48, %p49
      %p51 = scmp.ne.s32.totalorder %s37, %s38
      %p52 = scmp.eq.s32.totalorder %s30, 1
      %p53 = por %p51, %p52
      %p55 = scmp.ne.s32.totalorder %s38, %s54
      %p56 = scmp.eq.s32.totalorder %s30, 0
      %p57 = por %p55, %p56
      %s58 = ssub.s32 %s24, %s31
      %p59 = scmp.eq.s32.totalorder %s58, 0
      %s61 = sadd.s32 %s60, 1
      %s62 = scalar_select %p59, %s60, %s61
      %p65 = pneg %p59
      %p66 = scmp.eq.s32.totalorder %s24, 1
      %p67 = por %p65, %p66
      %p68 = scmp.ne.s32.totalorder %s60, %s63
      %p69 = scmp.eq.s32.totalorder %s24, 0
      %p70 = por %p68, %p69
      %p71 = scmp.ne.s32.totalorder %s60, %s63
      %p72 = scmp.eq.s32.totalorder %s29, 1
      %p73 = por %p71, %p72
      %p74 = scmp.ne.s32.totalorder %s63, %s64
      %p75 = scmp.eq.s32.totalorder %s29, 0
      %p76 = por %p74, %p75
      %p77 = scmp.ne.s32.totalorder %s63, %s64
      %p78 = scmp.eq.s32.totalorder %s30, 1
      %p79 = por %p77, %p78
      %p81 = scmp.ne.s32.totalorder %s64, %s80
      %p82 = scmp.eq.s32.totalorder %s30, 0
      %p83 = por %p81, %p82
      %s84 = ssub.s32 %s24, %s31
      %p85 = scmp.eq.s32.totalorder %s84, 0
      %s87 = sadd.s32 %s86, 1
      %s88 = scalar_select %p85, %s86, %s87
      %p91 = pneg %p85
      %p92 = scmp.eq.s32.totalorder %s24, 1
      %p93 = por %p91, %p92
      %p94 = scmp.ne.s32.totalorder %s86, %s89
      %p95 = scmp.eq.s32.totalorder %s24, 0
      %p96 = por %p94, %p95
      %p97 = scmp.ne.s32.totalorder %s86, %s89
      %p98 = scmp.eq.s32.totalorder %s29, 1
      %p99 = por %p97, %p98
      %p100 = scmp.ne.s32.totalorder %s89, %s90
      %p101 = scmp.eq.s32.totalorder %s29, 0
      %p102 = por %p100, %p101
      %p103 = scmp.ne.s32.totalorder %s89, %s90
      %p104 = scmp.eq.s32.totalorder %s30, 1
      %p105 = por %p103, %p104
      %p107 = scmp.ne.s32.totalorder %s90, %s106
      %p108 = scmp.eq.s32.totalorder %s30, 0
      %p109 = por %p107, %p108
      %s110 = ssub.s32 %s24, %s31
      %p111 = scmp.eq.s32.totalorder %s110, 0
      %s113 = sadd.s32 %s112, 1
      %s114 = scalar_select %p111, %s112, %s113
      %p117 = pneg %p111
      %p118 = scmp.eq.s32.totalorder %s24, 1
      %p119 = por %p117, %p118
      %p120 = scmp.ne.s32.totalorder %s112, %s115
      %p121 = scmp.eq.s32.totalorder %s24, 0
      %p122 = por %p120, %p121
      %p123 = scmp.ne.s32.totalorder %s112, %s115
      %p124 = scmp.eq.s32.totalorder %s29, 1
      %p125 = por %p123, %p124
      %p126 = scmp.ne.s32.totalorder %s115, %s116
      %p127 = scmp.eq.s32.totalorder %s29, 0
      %p128 = por %p126, %p127
      %p129 = scmp.ne.s32.totalorder %s115, %s116
      %p130 = scmp.eq.s32.totalorder %s30, 1
      %p131 = por %p129, %p130
      %p133 = scmp.ne.s32.totalorder %s116, %s132
      %p134 = scmp.eq.s32.totalorder %s30, 0
      %p135 = por %p133, %p134
      %s137 = sadd.s32 %s136, 1
      %p140 = scmp.eq.s32.totalorder %s24, 1
      %p141 = scmp.ne.s32.totalorder %s136, %s138
      %p142 = scmp.eq.s32.totalorder %s24, 0
      %p143 = por %p141, %p142
      %p144 = scmp.ne.s32.totalorder %s136, %s138
      %p145 = scmp.eq.s32.totalorder %s29, 1
      %p146 = por %p144, %p145
      %p147 = scmp.ne.s32.totalorder %s138, %s139
      %p148 = scmp.eq.s32.totalorder %s29, 0
      %p149 = por %p147, %p148
      %p150 = scmp.ne.s32.totalorder %s138, %s139
      %p151 = scmp.eq.s32.totalorder %s30, 1
      %p152 = por %p150, %p151
      %p154 = scmp.ne.s32.totalorder %s139, %s153
      %p155 = scmp.eq.s32.totalorder %s30, 0
      %p156 = por %p154, %p155
      %s158 = sadd.s32 %s157, 1
      %p161 = scmp.eq.s32.totalorder %s24, 1
      %p162 = scmp.ne.s32.totalorder %s157, %s159
      %p163 = scmp.eq.s32.totalorder %s24, 0
      %p164 = por %p162, %p163
      %p165 = scmp.ne.s32.totalorder %s157, %s159
      %p166 = scmp.eq.s32.totalorder %s29, 1
      %p167 = por %p165, %p166
      %p168 = scmp.ne.s32.totalorder %s159, %s160
      %p169 = scmp.eq.s32.totalorder %s29, 0
      %p170 = por %p168, %p169
      %p171 = scmp.ne.s32.totalorder %s159, %s160
      %p172 = scmp.eq.s32.totalorder %s30, 1
      %p173 = por %p171, %p172
      %p175 = scmp.ne.s32.totalorder %s160, %s174
      %p176 = scmp.eq.s32.totalorder %s30, 0
      %p177 = por %p175, %p176
      %s179 = sadd.s32 %s178, 1
      %p182 = scmp.eq.s32.totalorder %s24, 1
      %p183 = scmp.ne.s32.totalorder %s178, %s180
      %p184 = scmp.eq.s32.totalorder %s24, 0
      %p185 = por %p183, %p184
      %p186 = scmp.ne.s32.totalorder %s178, %s180
      %p187 = scmp.eq.s32.totalorder %s29, 1
      %p188 = por %p186, %p187
      %p189 = scmp.ne.s32.totalorder %s180, %s181
      %p190 = scmp.eq.s32.totalorder %s29, 0
      %p191 = por %p189, %p190
      %p192 = scmp.ne.s32.totalorder %s180, %s181
      %p193 = scmp.eq.s32.totalorder %s30, 1
      %p194 = por %p192, %p193
      %p196 = scmp.ne.s32.totalorder %s181, %s195
      %p197 = scmp.eq.s32.totalorder %s30, 0
      %p198 = por %p196, %p197
      %s200 = sadd.s32 %s199, 1
      %p203 = scmp.eq.s32.totalorder %s24, 1
      %p204 = scmp.ne.s32.totalorder %s199, %s201
      %p205 = scmp.eq.s32.totalorder %s24, 0
      %p206 = por %p204, %p205
      %p207 = scmp.ne.s32.totalorder %s199, %s201
      %p208 = scmp.eq.s32.totalorder %s29, 1
      %p209 = por %p207, %p208
      %p210 = scmp.ne.s32.totalorder %s201, %s202
      %p211 = scmp.eq.s32.totalorder %s29, 0
      %p212 = por %p210, %p211
      %p213 = scmp.ne.s32.totalorder %s201, %s202
      %p214 = scmp.eq.s32.totalorder %s30, 1
      %p215 = por %p213, %p214
      %p217 = scmp.ne.s32.totalorder %s202, %s216
      %p218 = scmp.eq.s32.totalorder %s30, 0
      %p219 = por %p217, %p218
      %s221 = sadd.s32 %s220, 1
      %p224 = scmp.eq.s32.totalorder %s24, 1
      %p225 = scmp.ne.s32.totalorder %s220, %s222
      %p226 = scmp.eq.s32.totalorder %s24, 0
      %p227 = por %p225, %p226
      %p228 = scmp.ne.s32.totalorder %s220, %s222
      %p229 = scmp.eq.s32.totalorder %s29, 1
      %p230 = por %p228, %p229
      %p231 = scmp.ne.s32.totalorder %s222, %s223
      %p232 = scmp.eq.s32.totalorder %s29, 0
      %p233 = por %p231, %p232
      %p234 = scmp.ne.s32.totalorder %s222, %s223
      %p235 = scmp.eq.s32.totalorder %s30, 1
      %p236 = por %p234, %p235
      %p238 = scmp.ne.s32.totalorder %s223, %s237
      %p239 = scmp.eq.s32.totalorder %s30, 0
      %p240 = por %p238, %p239
      %s242 = sadd.s32 %s241, 1
      %p245 = scmp.eq.s32.totalorder %s24, 1
      %p246 = scmp.ne.s32.totalorder %s241, %s243
      %p247 = scmp.eq.s32.totalorder %s24, 0
      %p248 = por %p246, %p247
      %p249 = scmp.ne.s32.totalorder %s241, %s243
      %p250 = scmp.eq.s32.totalorder %s29, 1
      %p251 = por %p249, %p250
      %p252 = scmp.ne.s32.totalorder %s243, %s244
      %p253 = scmp.eq.s32.totalorder %s29, 0
      %p254 = por %p252, %p253
      %p255 = scmp.ne.s32.totalorder %s243, %s244
      %p256 = scmp.eq.s32.totalorder %s30, 1
      %p257 = por %p255, %p256
      %p259 = scmp.ne.s32.totalorder %s244, %s258
      %p260 = scmp.eq.s32.totalorder %s30, 0
      %p261 = por %p259, %p260
      %s263 = sadd.s32 %s262, 1
      %p266 = scmp.eq.s32.totalorder %s24, 1
      %p267 = scmp.ne.s32.totalorder %s262, %s264
      %p268 = scmp.eq.s32.totalorder %s24, 0
      %p269 = por %p267, %p268
      %p270 = scmp.ne.s32.totalorder %s262, %s264
      %p271 = scmp.eq.s32.totalorder %s29, 1
      %p272 = por %p270, %p271
      %p273 = scmp.ne.s32.totalorder %s264, %s265
      %p274 = scmp.eq.s32.totalorder %s29, 0
      %p275 = por %p273, %p274
      %p276 = scmp.ne.s32.totalorder %s264, %s265
      %p277 = scmp.eq.s32.totalorder %s30, 1
      %p278 = por %p276, %p277
      %p280 = scmp.ne.s32.totalorder %s265, %s279
      %p281 = scmp.eq.s32.totalorder %s30, 0
      %p282 = por %p280, %p281
      %s283 = ssub.s32 %s24, %s31
      %p284 = scmp.eq.s32.totalorder %s283, 0
      %s286 = sadd.s32 %s285, 1
      %s287 = scalar_select %p284, %s285, %s286
      %p290 = pneg %p284
      %p291 = scmp.eq.s32.totalorder %s24, 1
      %p292 = por %p290, %p291
      %p293 = scmp.ne.s32.totalorder %s285, %s288
      %p294 = scmp.eq.s32.totalorder %s24, 0
      %p295 = por %p293, %p294
      %p296 = scmp.ne.s32.totalorder %s285, %s288
      %p297 = scmp.eq.s32.totalorder %s29, 1
      %p298 = por %p296, %p297
      %p299 = scmp.ne.s32.totalorder %s288, %s289
      %p300 = scmp.eq.s32.totalorder %s29, 0
      %p301 = por %p299, %p300
      %p302 = scmp.ne.s32.totalorder %s288, %s289
      %p303 = scmp.eq.s32.totalorder %s30, 1
      %p304 = por %p302, %p303
      %p306 = scmp.ne.s32.totalorder %s289, %s305
      %p307 = scmp.eq.s32.totalorder %s30, 0
      %p308 = por %p306, %p307
      %s309 = ssub.s32 %s24, %s31
      %p310 = scmp.eq.s32.totalorder %s309, 0
      %s312 = sadd.s32 %s311, 1
      %s313 = scalar_select %p310, %s311, %s312
      %p316 = pneg %p310
      %p317 = scmp.eq.s32.totalorder %s24, 1
      %p318 = por %p316, %p317
      %p319 = scmp.ne.s32.totalorder %s311, %s314
      %p320 = scmp.eq.s32.totalorder %s24, 0
      %p321 = por %p319, %p320
      %p322 = scmp.ne.s32.totalorder %s311, %s314
      %p323 = scmp.eq.s32.totalorder %s29, 1
      %p324 = por %p322, %p323
      %p325 = scmp.ne.s32.totalorder %s314, %s315
      %p326 = scmp.eq.s32.totalorder %s29, 0
      %p327 = por %p325, %p326
      %p328 = scmp.ne.s32.totalorder %s314, %s315
      %p329 = scmp.eq.s32.totalorder %s30, 1
      %p330 = por %p328, %p329
      %p332 = scmp.ne.s32.totalorder %s315, %s331
      %p333 = scmp.eq.s32.totalorder %s30, 0
      %p334 = por %p332, %p333
      %p335 = scmp.le.s32.totalorder 1, %s24
      %p336 = scmp.lt.s32.totalorder %s24, 3
      %p337 = pnand %p335, %p336
      %p338 = pneg %p337
      // Predicated region
      $region9: #{tpu_custom_call.1} parent=5 // pred_check
        _
      $region10: #{tpu_custom_call.1} parent=5 // pred_check_branch
        %340 = sbr.rel (%p337) target = $region12
      $region11: #{tpu_custom_call.1} parent=5 // pred_region
        %s341 = ssub.s32 %s24, 1
        // Predicated region
        $region13: #{tpu_custom_call.1} parent=11 // pred_check
          %p342 = pneg %p149
        $region14: #{tpu_custom_call.1} parent=11 // pred_check_branch
          %344 = sbr.rel (%p342) target = $region16
        $region15: #{tpu_custom_call.1} parent=11 // pred_region
          _
        $region16: #{tpu_custom_call.1} parent=11 // pred_fallthru
          _
        // Predicated region
        $region17: #{tpu_custom_call.1} parent=11 // pred_check
          %p345 = pneg %p170
        $region18: #{tpu_custom_call.1} parent=11 // pred_check_branch
          %347 = sbr.rel (%p345) target = $region20
        $region19: #{tpu_custom_call.1} parent=11 // pred_region
          _
        $region20: #{tpu_custom_call.1} parent=11 // pred_fallthru
          _
        // Predicated region
        $region21: #{tpu_custom_call.1} parent=11 // pred_check
          %p348 = pneg %p191
        $region22: #{tpu_custom_call.1} parent=11 // pred_check_branch
          %350 = sbr.rel (%p348) target = $region24
        $region23: #{tpu_custom_call.1} parent=11 // pred_region
          _
        $region24: #{tpu_custom_call.1} parent=11 // pred_fallthru
          _
        // Predicated region
        $region25: #{tpu_custom_call.1} parent=11 // pred_check
          %p351 = pneg %p212
        $region26: #{tpu_custom_call.1} parent=11 // pred_check_branch
          %353 = sbr.rel (%p351) target = $region28
        $region27: #{tpu_custom_call.1} parent=11 // pred_region
          _
        $region28: #{tpu_custom_call.1} parent=11 // pred_fallthru
          _
        // Predicated region
        $region29: #{tpu_custom_call.1} parent=11 // pred_check
          %p354 = pneg %p233
        $region30: #{tpu_custom_call.1} parent=11 // pred_check_branch
          %356 = sbr.rel (%p354) target = $region32
        $region31: #{tpu_custom_call.1} parent=11 // pred_region
          _
        $region32: #{tpu_custom_call.1} parent=11 // pred_fallthru
          _
        // Predicated region
        $region33: #{tpu_custom_call.1} parent=11 // pred_check
          %p357 = pneg %p254
        $region34: #{tpu_custom_call.1} parent=11 // pred_check_branch
          %359 = sbr.rel (%p357) target = $region36
        $region35: #{tpu_custom_call.1} parent=11 // pred_region
          _
        $region36: #{tpu_custom_call.1} parent=11 // pred_fallthru
          _
        // Predicated region
        $region37: #{tpu_custom_call.1} parent=11 // pred_check
          %p360 = pneg %p275
        $region38: #{tpu_custom_call.1} parent=11 // pred_check_branch
          %362 = sbr.rel (%p360) target = $region40
        $region39: #{tpu_custom_call.1} parent=11 // pred_region
          _
        $region40: #{tpu_custom_call.1} parent=11 // pred_fallthru
          _
      $region12: #{tpu_custom_call.1} parent=5 // pred_fallthru
        _
      %p363 = scmp.lt.s32.totalorder %s24, 2
      // Predicated region
      $region41: #{tpu_custom_call.1} parent=5 // pred_check
        %p364 = pneg %p363
      $region42: #{tpu_custom_call.1} parent=5 // pred_check_branch
        %366 = sbr.rel (%p364) target = $region44
      $region43: #{tpu_custom_call.1} parent=5 // pred_region
        // Predicated region
        $region45: #{tpu_custom_call.1} parent=43 // pred_check
          %p367 = pneg %p44
        $region46: #{tpu_custom_call.1} parent=43 // pred_check_branch
          %369 = sbr.rel (%p367) target = $region48
        $region47: #{tpu_custom_call.1} parent=43 // pred_region
          %s370 = smul.u32 8, %s24
          %p371 = scmp.lt.s32.totalorder %s370, 15
          %s372 = scalar_select %p371, %s370, 15
          %s373 = smul.addr %s372, 8
          %s374 = scalar_lea.vmem %s0, %s373
          %s375 = smul.u32 8, %s24
        $region48: #{tpu_custom_call.1} parent=43 // pred_fallthru
          _
        // Predicated region
        $region49: #{tpu_custom_call.1} parent=43 // pred_check
          %p376 = pneg %p70
        $region50: #{tpu_custom_call.1} parent=43 // pred_check_branch
          %378 = sbr.rel (%p376) target = $region52
        $region51: #{tpu_custom_call.1} parent=43 // pred_region
          %s379 = smul.u32 8, %s24
          %p380 = scmp.lt.s32.totalorder %s379, 15
          %s381 = scalar_select %p380, %s379, 15
          %s382 = smul.addr %s381, 8
          %s383 = scalar_lea.vmem %s1, %s382
          %s384 = smul.u32 8, %s24
        $region52: #{tpu_custom_call.1} parent=43 // pred_fallthru
          _
        // Predicated region
        $region53: #{tpu_custom_call.1} parent=43 // pred_check
          %p385 = pneg %p96
        $region54: #{tpu_custom_call.1} parent=43 // pred_check_branch
          %387 = sbr.rel (%p385) target = $region56
        $region55: #{tpu_custom_call.1} parent=43 // pred_region
          %p388 = scmp.lt.s32.totalorder %s24, 1
          %s389 = scalar_select %p388, %s24, 1
          %s390 = smul.addr %s389, 8
          %s391 = scalar_lea.vmem %s2, %s390
        $region56: #{tpu_custom_call.1} parent=43 // pred_fallthru
          _
        // Predicated region
        $region57: #{tpu_custom_call.1} parent=43 // pred_check
          %p392 = pneg %p122
        $region58: #{tpu_custom_call.1} parent=43 // pred_check_branch
          %394 = sbr.rel (%p392) target = $region60
        $region59: #{tpu_custom_call.1} parent=43 // pred_region
          %p395 = scmp.lt.s32.totalorder %s24, 1
          %s396 = scalar_select %p395, %s24, 1
          %s397 = smul.addr %s396, 8
          %s398 = scalar_lea.vmem %s3, %s397
        $region60: #{tpu_custom_call.1} parent=43 // pred_fallthru
          _
      $region44: #{tpu_custom_call.1} parent=5 // pred_fallthru
        _
      %p399 = scmp.le.s32.totalorder 1, %s24
      %p400 = scmp.lt.s32.totalorder %s24, 3
      %p401 = pnand %p399, %p400
      %p402 = pneg %p401
      // Predicated region
      $region61: #{tpu_custom_call.1} parent=5 // pred_check
        _
      $region62: #{tpu_custom_call.1} parent=5 // pred_check_branch
        %404 = sbr.rel (%p401) target = $region64
      $region63: #{tpu_custom_call.1} parent=5 // pred_region
        %s405 = ssub.s32 %s24, 1
        %s406 = smul.u32 8, %s29
        %p407 = scmp.lt.s32.totalorder %s406, 15
        %s408 = scalar_select %p407, %s406, 15
        %s409 = smul.addr %s408, 8
        %s410 = scalar_lea.vmem %s0, %s409
        %p411 = pneg %p50
        %p412 = pneg %p47
        %s413 = smul.u32 8, %s29
        %p414 = scmp.lt.s32.totalorder %s413, 15
        %s415 = scalar_select %p414, %s413, 15
        %s416 = smul.addr %s415, 8
        %s417 = scalar_lea.vmem %s1, %s416
        %p418 = pneg %p76
        %p419 = pneg %p73
        %p420 = scmp.lt.s32.totalorder %s29, 1
        %s421 = scalar_select %p420, %s29, 1
        %s422 = smul.addr %s421, 8
        %s423 = scalar_lea.vmem %s2, %s422
        %p424 = pneg %p102
        %p425 = pneg %p99
        %p426 = scmp.lt.s32.totalorder %s29, 1
        %s427 = scalar_select %p426, %s29, 1
        %s428 = smul.addr %s427, 8
        %s429 = scalar_lea.vmem %s3, %s428
        %p430 = pneg %p128
        %p431 = pneg %p125
        %p432 = pneg %p149
        %p433 = pneg %p146
        %p434 = pneg %p170
        %p435 = pneg %p167
        %p436 = pneg %p191
        %p437 = pneg %p188
        %p438 = pneg %p212
        %p439 = pneg %p209
        %p440 = pneg %p233
        %p441 = pneg %p230
        %p442 = pneg %p254
        %p443 = pneg %p251
        %p444 = pneg %p275
        %p445 = pneg %p272
        %p446 = pneg %p301
        %p447 = pneg %p298
        %s448 = sand.u32 %s288, 1
        %s449 = scalar_lea.sflag [#allocation4], %s448
        %s450 = sand.u32 %s288, 1
        %s451 = smul.addr %s450, 8
        %s452 = scalar_lea.vmem [#allocation3], %s451
        %p453 = pneg %p327
        %p454 = pneg %p324
        %p455 = scmp.lt.s32.totalorder %s29, 1
        %s456 = scalar_select %p455, %s29, 1
        %s457 = smul.addr %s456, 8
        %s458 = scalar_lea.vmem %s12, %s457
        %s459 = smul.u32 8, %s29
        %p460 = scmp.lt.s32.totalorder %s459, 15
        %s461 = scalar_select %p460, %s459, 15
        %s462 = smul.addr %s461, 8
        %s463 = scalar_lea.vmem %s0, %s462
        %s464 = smul.u32 8, %s29
        %s465 = smul.u32 8, %s29
        %p466 = scmp.lt.s32.totalorder %s465, 15
        %s467 = scalar_select %p466, %s465, 15
        %s468 = smul.addr %s467, 8
        %s469 = scalar_lea.vmem %s1, %s468
        %s470 = smul.u32 8, %s29
        %p471 = scmp.lt.s32.totalorder %s29, 1
        %s472 = scalar_select %p471, %s29, 1
        %s473 = smul.addr %s472, 8
        %s474 = scalar_lea.vmem %s2, %s473
        %p475 = scmp.lt.s32.totalorder %s29, 1
        %s476 = scalar_select %p475, %s29, 1
        %s477 = smul.addr %s476, 8
        %s478 = scalar_lea.vmem %s3, %s477
        %s479 = smul.u32 8, %s29
        %p480 = scmp.lt.s32.totalorder %s29, 1
        %s481 = scalar_select %p480, %s29, 1
        %s482 = smul.addr %s481, 8
        %s483 = scalar_lea.vmem %s12, %s482
        %v484 = vld [vmem:[%s463] sm:$0xff]
        %v485 = vld [vmem:[%s463 + $0x8] sm:$0xff]
        %v486 = vld [vmem:[%s463 + $0x10] sm:$0xff]
        %v487 = vld [vmem:[%s463 + $0x18] sm:$0xff]
        %v488 = vld [vmem:[%s463 + $0x20] sm:$0xff]
        %v489 = vld [vmem:[%s463 + $0x28] sm:$0xff]
        %v490 = vld [vmem:[%s463 + $0x30] sm:$0xff]
        %v491 = vld [vmem:[%s463 + $0x38] sm:$0xff]
        %v492 = vld [vmem:[%s4] sm:$0xff]
        %v493 = vld [vmem:[%s4 + $0x8] sm:$0xff]
        %v494 = vld [vmem:[%s5] sm:$0x1]
        %v496 = vlaneseq
        %v497 = vshrl.u32 %v496, 7
        %v498 = vsub.s32 0, %v497
        %v499 = vrot.slane %v494, %v498
        %vm501 = vcmask 130048
        %v503 = vsel %vm501, %v484, 0
        %v506 = vsel %vm501, %v485, 0
        %v509 = vsel %vm501, %v486, 0
        %v512 = vsel %vm501, %v487, 0
        %v515 = vsel %vm501, %v488, 0
        %v518 = vsel %vm501, %v489, 0
        %v521 = vsel %vm501, %v490, 0
        %v524 = vsel %vm501, %v491, 0
        %526 = vmatprep.subr.mxu0 0.0
        %527 = vmatpush1.msra.mxu0 0.0
        %528 = vmatprep.subr.mxu0 0.0
        %529 = vmatpush1.msra.mxu0 0.0
        %530 = vmatprep.subr.mxu0 0.0
        %531 = vmatpush1.msra.mxu0 0.0
        %532 = vmatprep.subr.mxu0 0.0
        %533 = vmatpush1.msra.mxu0 0.0
        %534 = vmatprep.subr.mxu0 0.0
        %535 = vmatpush1.msra.mxu0 0.0
        %536 = vmatprep.subr.mxu0 0.0
        %537 = vmatpush1.msra.mxu0 0.0
        %538 = vmatprep.subr.mxu0 0.0
        %539 = vmatpush1.msra.mxu0 0.0
        %540 = vmatprep.subr.mxu0 0.0
        %541 = vmatpush1.msra.mxu0 0.0
        %542 = vmatprep.subr.mxu0 0.0
        %543 = vmatpush1.msra.mxu0 0.0
        %544 = vmatprep.subr.mxu0 0.0
        %545 = vmatpush1.msra.mxu0 0.0
        %546 = vmatprep.subr.mxu0 0.0
        %547 = vmatpush1.msra.mxu0 0.0
        %548 = vmatprep.subr.mxu0 0.0
        %549 = vmatpush1.msra.mxu0 0.0
        %550 = vmatprep.subr.mxu0 0.0
        %551 = vmatpush1.msra.mxu0 0.0
        %552 = vmatprep.subr.mxu0 0.0
        %553 = vmatpush1.msra.mxu0 0.0
        %554 = vmatprep.subr.mxu0 0.0
        %555 = vmatpush1.msra.mxu0 %v493
        %556 = vmatprep.subr.mxu0 0.0
        %557 = vmatpush1.msra.mxu0 %v492
        %558 = vmatprep.subr.mxu0 0.0
        %559 = vmatpush2.msra.mxu0 0.0
        %560 = vmatprep.subr.mxu0 0.0
        %561 = vmatpush2.msra.mxu0 0.0
        %562 = vmatprep.subr.mxu0 0.0
        %563 = vmatpush2.msra.mxu0 0.0
        %564 = vmatprep.subr.mxu0 0.0
        %565 = vmatpush2.msra.mxu0 0.0
        %566 = vmatprep.subr.mxu0 0.0
        %567 = vmatpush2.msra.mxu0 0.0
        %568 = vmatprep.subr.mxu0 0.0
        %569 = vmatpush2.msra.mxu0 0.0
        %570 = vmatprep.subr.mxu0 0.0
        %571 = vmatpush2.msra.mxu0 0.0
        %572 = vmatprep.subr.mxu0 0.0
        %573 = vmatpush2.msra.mxu0 0.0
        %574 = vmatprep.subr.mxu0 0.0
        %575 = vmatpush2.msra.mxu0 0.0
        %576 = vmatprep.subr.mxu0 0.0
        %577 = vmatpush2.msra.mxu0 0.0
        %578 = vmatprep.subr.mxu0 0.0
        %579 = vmatpush2.msra.mxu0 0.0
        %580 = vmatprep.subr.mxu0 0.0
        %581 = vmatpush2.msra.mxu0 0.0
        %582 = vmatprep.subr.mxu0 0.0
        %583 = vmatpush2.msra.mxu0 0.0
        %584 = vmatprep.subr.mxu0 0.0
        %585 = vmatpush2.msra.mxu0 0.0
        %586 = vmatprep.subr.mxu0 0.0
        %587 = vmatpush2.msra.mxu0 0.0
        %588 = vmatprep.subr.mxu0 0.0
        %589 = vmatpush2.msra.mxu0 0.0
        %590 = vmatprep.mubr.f32.mxu0 0.0
        %591 = vmatmul.mubr.f32.gmra.mxu0 %v503
        %v592 = vpop.f32.mrf.mxu0
        %v593 = vadd.f32 %v499, %v592
        %v594 = vpop.f32.mrf.mxu0
        %595 = vmatprep.mubr.f32.mxu0 0.0
        %596 = vmatmul.mubr.f32.gmra.mxu0 %v506
        %v597 = vpop.f32.mrf.mxu0
        %v598 = vadd.f32 %v499, %v597
        %v599 = vpop.f32.mrf.mxu0
        %600 = vmatprep.mubr.f32.mxu0 0.0
        %601 = vmatmul.mubr.f32.gmra.mxu0 %v509
        %v602 = vpop.f32.mrf.mxu0
        %v603 = vadd.f32 %v499, %v602
        %v604 = vpop.f32.mrf.mxu0
        %605 = vmatprep.mubr.f32.mxu0 0.0
        %606 = vmatmul.mubr.f32.gmra.mxu0 %v512
        %v607 = vpop.f32.mrf.mxu0
        %v608 = vadd.f32 %v499, %v607
        %v609 = vpop.f32.mrf.mxu0
        %610 = vmatprep.mubr.f32.mxu0 0.0
        %611 = vmatmul.mubr.f32.gmra.mxu0 %v515
        %v612 = vpop.f32.mrf.mxu0
        %v613 = vadd.f32 %v499, %v612
        %v614 = vpop.f32.mrf.mxu0
        %615 = vmatprep.mubr.f32.mxu0 0.0
        %616 = vmatmul.mubr.f32.gmra.mxu0 %v518
        %v617 = vpop.f32.mrf.mxu0
        %v618 = vadd.f32 %v499, %v617
        %v619 = vpop.f32.mrf.mxu0
        %620 = vmatprep.mubr.f32.mxu0 0.0
        %621 = vmatmul.mubr.f32.gmra.mxu0 %v521
        %v622 = vpop.f32.mrf.mxu0
        %v623 = vadd.f32 %v499, %v622
        %v624 = vpop.f32.mrf.mxu0
        %625 = vmatprep.mubr.f32.mxu0 0.0
        %626 = vmatmul.mubr.f32.gmra.mxu0 %v524
        %v627 = vpop.f32.mrf.mxu0
        %v628 = vadd.f32 %v499, %v627
        %v629 = vpop.f32.mrf.mxu0
        %630 = vdwg.mxu0
        %v631 = vld [vmem:[%s469] sm:$0xff]
        %v632 = vld [vmem:[%s469 + $0x8] sm:$0xff]
        %v633 = vld [vmem:[%s469 + $0x10] sm:$0xff]
        %v634 = vld [vmem:[%s469 + $0x18] sm:$0xff]
        %v635 = vld [vmem:[%s469 + $0x20] sm:$0xff]
        %v636 = vld [vmem:[%s469 + $0x28] sm:$0xff]
        %v637 = vld [vmem:[%s469 + $0x30] sm:$0xff]
        %v638 = vld [vmem:[%s469 + $0x38] sm:$0xff]
        %v639 = vld [vmem:[%s7] sm:$0x7f]
        %vm640 = vcmask 56320
        %v642 = vsel %vm640, %v631, 0
        %v645 = vsel %vm640, %v632, 0
        %v648 = vsel %vm640, %v633, 0
        %v651 = vsel %vm640, %v634, 0
        %v654 = vsel %vm640, %v635, 0
        %v657 = vsel %vm640, %v636, 0
        %v660 = vsel %vm640, %v637, 0
        %v663 = vsel %vm640, %v638, 0
        %vm665 = vcmask 1046528
        %v667 = vsel %vm665, %v639, 0
        %669 = vmatprep.subr.mxu0 0.0
        %670 = vmatpush1.msra.mxu0 0.0
        %671 = vmatprep.subr.mxu0 0.0
        %672 = vmatpush1.msra.mxu0 0.0
        %673 = vmatprep.subr.mxu0 0.0
        %674 = vmatpush1.msra.mxu0 0.0
        %675 = vmatprep.subr.mxu0 0.0
        %676 = vmatpush1.msra.mxu0 0.0
        %677 = vmatprep.subr.mxu0 0.0
        %678 = vmatpush1.msra.mxu0 0.0
        %679 = vmatprep.subr.mxu0 0.0
        %680 = vmatpush1.msra.mxu0 0.0
        %681 = vmatprep.subr.mxu0 0.0
        %682 = vmatpush1.msra.mxu0 0.0
        %683 = vmatprep.subr.mxu0 0.0
        %684 = vmatpush1.msra.mxu0 0.0
        %685 = vmatprep.subr.mxu0 0.0
        %686 = vmatpush1.msra.mxu0 0.0
        %687 = vmatprep.subr.mxu0 0.0
        %688 = vmatpush1.msra.mxu0 0.0
        %689 = vmatprep.subr.mxu0 0.0
        %690 = vmatpush1.msra.mxu0 0.0
        %691 = vmatprep.subr.mxu0 0.0
        %692 = vmatpush1.msra.mxu0 0.0
        %693 = vmatprep.subr.mxu0 0.0
        %694 = vmatpush1.msra.mxu0 0.0
        %695 = vmatprep.subr.mxu0 0.0
        %696 = vmatpush1.msra.mxu0 0.0
        %697 = vmatprep.subr.mxu0 0.0
        %698 = vmatpush1.msra.mxu0 0.0
        %699 = vmatprep.subr.mxu0 0.0
        %700 = vmatpush1.msra.mxu0 %v667
        %701 = vmatprep.subr.mxu0 0.0
        %702 = vmatpush2.msra.mxu0 0.0
        %703 = vmatprep.subr.mxu0 0.0
        %704 = vmatpush2.msra.mxu0 0.0
        %705 = vmatprep.subr.mxu0 0.0
        %706 = vmatpush2.msra.mxu0 0.0
        %707 = vmatprep.subr.mxu0 0.0
        %708 = vmatpush2.msra.mxu0 0.0
        %709 = vmatprep.subr.mxu0 0.0
        %710 = vmatpush2.msra.mxu0 0.0
        %711 = vmatprep.subr.mxu0 0.0
        %712 = vmatpush2.msra.mxu0 0.0
        %713 = vmatprep.subr.mxu0 0.0
        %714 = vmatpush2.msra.mxu0 0.0
        %715 = vmatprep.subr.mxu0 0.0
        %716 = vmatpush2.msra.mxu0 0.0
        %717 = vmatprep.subr.mxu0 0.0
        %718 = vmatpush2.msra.mxu0 0.0
        %719 = vmatprep.subr.mxu0 0.0
        %720 = vmatpush2.msra.mxu0 0.0
        %721 = vmatprep.subr.mxu0 0.0
        %722 = vmatpush2.msra.mxu0 0.0
        %723 = vmatprep.subr.mxu0 0.0
        %724 = vmatpush2.msra.mxu0 0.0
        %725 = vmatprep.subr.mxu0 0.0
        %726 = vmatpush2.msra.mxu0 0.0
        %727 = vmatprep.subr.mxu0 0.0
        %728 = vmatpush2.msra.mxu0 0.0
        %729 = vmatprep.subr.mxu0 0.0
        %730 = vmatpush2.msra.mxu0 0.0
        %731 = vmatprep.subr.mxu0 0.0
        %732 = vmatpush2.msra.mxu0 0.0
        %733 = vmatprep.mubr.f32.mxu0 0.0
        %734 = vmatmul.mubr.f32.gmra.mxu0 %v642
        %v735 = vpop.f32.mrf.mxu0
        %v736 = vadd.f32 0.0, %v735
        %v737 = vpop.f32.mrf.mxu0
        %738 = vmatprep.mubr.f32.mxu0 0.0
        %739 = vmatmul.mubr.f32.gmra.mxu0 %v645
        %v740 = vpop.f32.mrf.mxu0
        %v741 = vadd.f32 0.0, %v740
        %v742 = vpop.f32.mrf.mxu0
        %743 = vmatprep.mubr.f32.mxu0 0.0
        %744 = vmatmul.mubr.f32.gmra.mxu0 %v648
        %v745 = vpop.f32.mrf.mxu0
        %v746 = vadd.f32 0.0, %v745
        %v747 = vpop.f32.mrf.mxu0
        %748 = vmatprep.mubr.f32.mxu0 0.0
        %749 = vmatmul.mubr.f32.gmra.mxu0 %v651
        %v750 = vpop.f32.mrf.mxu0
        %v751 = vadd.f32 0.0, %v750
        %v752 = vpop.f32.mrf.mxu0
        %753 = vmatprep.mubr.f32.mxu0 0.0
        %754 = vmatmul.mubr.f32.gmra.mxu0 %v654
        %v755 = vpop.f32.mrf.mxu0
        %v756 = vadd.f32 0.0, %v755
        %v757 = vpop.f32.mrf.mxu0
        %758 = vmatprep.mubr.f32.mxu0 0.0
        %759 = vmatmul.mubr.f32.gmra.mxu0 %v657
        %v760 = vpop.f32.mrf.mxu0
        %v761 = vadd.f32 0.0, %v760
        %v762 = vpop.f32.mrf.mxu0
        %763 = vmatprep.mubr.f32.mxu0 0.0
        %764 = vmatmul.mubr.f32.gmra.mxu0 %v660
        %v765 = vpop.f32.mrf.mxu0
        %v766 = vadd.f32 0.0, %v765
        %v767 = vpop.f32.mrf.mxu0
        %768 = vmatprep.mubr.f32.mxu0 0.0
        %769 = vmatmul.mubr.f32.gmra.mxu0 %v663
        %v770 = vpop.f32.mrf.mxu0
        %v771 = vadd.f32 0.0, %v770
        %v772 = vpop.f32.mrf.mxu0
        %773 = vdwg.mxu0
        %v774 = vld [vmem:[%s8] sm:$0xf]
        %vm775 = vcmask 31744
        %v777 = vsel %vm775, %v736, 0
        %v780 = vsel %vm775, %v741, 0
        %v783 = vsel %vm775, %v746, 0
        %v786 = vsel %vm775, %v751, 0
        %v789 = vsel %vm775, %v756, 0
        %v792 = vsel %vm775, %v761, 0
        %v795 = vsel %vm775, %v766, 0
        %v798 = vsel %vm775, %v771, 0
        %vm800 = vcmask 1043456
        %v802 = vsel %vm800, %v774, 0
        %804 = vmatprep.subr.mxu0 0.0
        %805 = vmatpush1.msra.mxu0 0.0
        %806 = vmatprep.subr.mxu0 0.0
        %807 = vmatpush1.msra.mxu0 0.0
        %808 = vmatprep.subr.mxu0 0.0
        %809 = vmatpush1.msra.mxu0 0.0
        %810 = vmatprep.subr.mxu0 0.0
        %811 = vmatpush1.msra.mxu0 0.0
        %812 = vmatprep.subr.mxu0 0.0
        %813 = vmatpush1.msra.mxu0 0.0
        %814 = vmatprep.subr.mxu0 0.0
        %815 = vmatpush1.msra.mxu0 0.0
        %816 = vmatprep.subr.mxu0 0.0
        %817 = vmatpush1.msra.mxu0 0.0
        %818 = vmatprep.subr.mxu0 0.0
        %819 = vmatpush1.msra.mxu0 0.0
        %820 = vmatprep.subr.mxu0 0.0
        %821 = vmatpush1.msra.mxu0 0.0
        %822 = vmatprep.subr.mxu0 0.0
        %823 = vmatpush1.msra.mxu0 0.0
        %824 = vmatprep.subr.mxu0 0.0
        %825 = vmatpush1.msra.mxu0 0.0
        %826 = vmatprep.subr.mxu0 0.0
        %827 = vmatpush1.msra.mxu0 0.0
        %828 = vmatprep.subr.mxu0 0.0
        %829 = vmatpush1.msra.mxu0 0.0
        %830 = vmatprep.subr.mxu0 0.0
        %831 = vmatpush1.msra.mxu0 0.0
        %832 = vmatprep.subr.mxu0 0.0
        %833 = vmatpush1.msra.mxu0 0.0
        %834 = vmatprep.subr.mxu0 0.0
        %835 = vmatpush1.msra.mxu0 %v802
        %836 = vmatprep.subr.mxu0 0.0
        %837 = vmatpush2.msra.mxu0 0.0
        %838 = vmatprep.subr.mxu0 0.0
        %839 = vmatpush2.msra.mxu0 0.0
        %840 = vmatprep.subr.mxu0 0.0
        %841 = vmatpush2.msra.mxu0 0.0
        %842 = vmatprep.subr.mxu0 0.0
        %843 = vmatpush2.msra.mxu0 0.0
        %844 = vmatprep.subr.mxu0 0.0
        %845 = vmatpush2.msra.mxu0 0.0
        %846 = vmatprep.subr.mxu0 0.0
        %847 = vmatpush2.msra.mxu0 0.0
        %848 = vmatprep.subr.mxu0 0.0
        %849 = vmatpush2.msra.mxu0 0.0
        %850 = vmatprep.subr.mxu0 0.0
        %851 = vmatpush2.msra.mxu0 0.0
        %852 = vmatprep.subr.mxu0 0.0
        %853 = vmatpush2.msra.mxu0 0.0
        %854 = vmatprep.subr.mxu0 0.0
        %855 = vmatpush2.msra.mxu0 0.0
        %856 = vmatprep.subr.mxu0 0.0
        %857 = vmatpush2.msra.mxu0 0.0
        %858 = vmatprep.subr.mxu0 0.0
        %859 = vmatpush2.msra.mxu0 0.0
        %860 = vmatprep.subr.mxu0 0.0
        %861 = vmatpush2.msra.mxu0 0.0
        %862 = vmatprep.subr.mxu0 0.0
        %863 = vmatpush2.msra.mxu0 0.0
        %864 = vmatprep.subr.mxu0 0.0
        %865 = vmatpush2.msra.mxu0 0.0
        %866 = vmatprep.subr.mxu0 0.0
        %867 = vmatpush2.msra.mxu0 0.0
        %868 = vmatprep.mubr.f32.mxu0 0.0
        %869 = vmatmul.mubr.f32.gmra.mxu0 %v777
        %v870 = vpop.f32.mrf.mxu0
        %v871 = vadd.f32 0.0, %v870
        %v872 = vpop.f32.mrf.mxu0
        %873 = vmatprep.mubr.f32.mxu0 0.0
        %874 = vmatmul.mubr.f32.gmra.mxu0 %v780
        %v875 = vpop.f32.mrf.mxu0
        %v876 = vadd.f32 0.0, %v875
        %v877 = vpop.f32.mrf.mxu0
        %878 = vmatprep.mubr.f32.mxu0 0.0
        %879 = vmatmul.mubr.f32.gmra.mxu0 %v783
        %v880 = vpop.f32.mrf.mxu0
        %v881 = vadd.f32 0.0, %v880
        %v882 = vpop.f32.mrf.mxu0
        %883 = vmatprep.mubr.f32.mxu0 0.0
        %884 = vmatmul.mubr.f32.gmra.mxu0 %v786
        %v885 = vpop.f32.mrf.mxu0
        %v886 = vadd.f32 0.0, %v885
        %v887 = vpop.f32.mrf.mxu0
        %888 = vmatprep.mubr.f32.mxu0 0.0
        %889 = vmatmul.mubr.f32.gmra.mxu0 %v789
        %v890 = vpop.f32.mrf.mxu0
        %v891 = vadd.f32 0.0, %v890
        %v892 = vpop.f32.mrf.mxu0
        %893 = vmatprep.mubr.f32.mxu0 0.0
        %894 = vmatmul.mubr.f32.gmra.mxu0 %v792
        %v895 = vpop.f32.mrf.mxu0
        %v896 = vadd.f32 0.0, %v895
        %v897 = vpop.f32.mrf.mxu0
        %898 = vmatprep.mubr.f32.mxu0 0.0
        %899 = vmatmul.mubr.f32.gmra.mxu0 %v795
        %v900 = vpop.f32.mrf.mxu0
        %v901 = vadd.f32 0.0, %v900
        %v902 = vpop.f32.mrf.mxu0
        %903 = vmatprep.mubr.f32.mxu0 0.0
        %904 = vmatmul.mubr.f32.gmra.mxu0 %v798
        %v905 = vpop.f32.mrf.mxu0
        %v906 = vadd.f32 0.0, %v905
        %v907 = vpop.f32.mrf.mxu0
        %908 = vdwg.mxu0
        %v909 = vld [vmem:[%s474] sm:$0xff]
        %v910 = vld [vmem:[%s6] sm:$0xff]
        %v911 = vld [vmem:[%s6 + $0x8] sm:$0xff]
        %v912 = vld [vmem:[%s6 + $0x10] sm:$0xff]
        %v913 = vld [vmem:[%s6 + $0x18] sm:$0xff]
        %vm914 = vcmask 261120
        %v916 = vsel %vm914, %v909, 0
        %918 = vmatprep.subr.mxu0 0.0
        %919 = vmatpush1.msra.mxu0 0.0
        %920 = vmatprep.subr.mxu0 0.0
        %921 = vmatpush1.msra.mxu0 0.0
        %922 = vmatprep.subr.mxu0 0.0
        %923 = vmatpush1.msra.mxu0 0.0
        %924 = vmatprep.subr.mxu0 0.0
        %925 = vmatpush1.msra.mxu0 0.0
        %926 = vmatprep.subr.mxu0 0.0
        %927 = vmatpush1.msra.mxu0 0.0
        %928 = vmatprep.subr.mxu0 0.0
        %929 = vmatpush1.msra.mxu0 0.0
        %930 = vmatprep.subr.mxu0 0.0
        %931 = vmatpush1.msra.mxu0 0.0
        %932 = vmatprep.subr.mxu0 0.0
        %933 = vmatpush1.msra.mxu0 0.0
        %934 = vmatprep.subr.mxu0 0.0
        %935 = vmatpush1.msra.mxu0 0.0
        %936 = vmatprep.subr.mxu0 0.0
        %937 = vmatpush1.msra.mxu0 0.0
        %938 = vmatprep.subr.mxu0 0.0
        %939 = vmatpush1.msra.mxu0 0.0
        %940 = vmatprep.subr.mxu0 0.0
        %941 = vmatpush1.msra.mxu0 0.0
        %942 = vmatprep.subr.mxu0 0.0
        %943 = vmatpush1.msra.mxu0 %v913
        %944 = vmatprep.subr.mxu0 0.0
        %945 = vmatpush1.msra.mxu0 %v912
        %946 = vmatprep.subr.mxu0 0.0
        %947 = vmatpush1.msra.mxu0 %v911
        %948 = vmatprep.subr.mxu0 0.0
        %949 = vmatpush1.msra.mxu0 %v910
        %950 = vmatprep.subr.mxu0 0.0
        %951 = vmatpush2.msra.mxu0 0.0
        %952 = vmatprep.subr.mxu0 0.0
        %953 = vmatpush2.msra.mxu0 0.0
        %954 = vmatprep.subr.mxu0 0.0
        %955 = vmatpush2.msra.mxu0 0.0
        %956 = vmatprep.subr.mxu0 0.0
        %957 = vmatpush2.msra.mxu0 0.0
        %958 = vmatprep.subr.mxu0 0.0
        %959 = vmatpush2.msra.mxu0 0.0
        %960 = vmatprep.subr.mxu0 0.0
        %961 = vmatpush2.msra.mxu0 0.0
        %962 = vmatprep.subr.mxu0 0.0
        %963 = vmatpush2.msra.mxu0 0.0
        %964 = vmatprep.subr.mxu0 0.0
        %965 = vmatpush2.msra.mxu0 0.0
        %966 = vmatprep.subr.mxu0 0.0
        %967 = vmatpush2.msra.mxu0 0.0
        %968 = vmatprep.subr.mxu0 0.0
        %969 = vmatpush2.msra.mxu0 0.0
        %970 = vmatprep.subr.mxu0 0.0
        %971 = vmatpush2.msra.mxu0 0.0
        %972 = vmatprep.subr.mxu0 0.0
        %973 = vmatpush2.msra.mxu0 0.0
        %974 = vmatprep.subr.mxu0 0.0
        %975 = vmatpush2.msra.mxu0 0.0
        %976 = vmatprep.subr.mxu0 0.0
        %977 = vmatpush2.msra.mxu0 0.0
        %978 = vmatprep.subr.mxu0 0.0
        %979 = vmatpush2.msra.mxu0 0.0
        %980 = vmatprep.subr.mxu0 0.0
        %981 = vmatpush2.msra.mxu0 0.0
        %982 = vmatprep.mubr.f32.mxu0 0.0
        %983 = vmatmul.mubr.f32.gmra.mxu0 %v916
        %v984 = vpop.f32.mrf.mxu0
        %v985 = vadd.f32 0.0, %v984
        %v986 = vpop.f32.mrf.mxu0
        %987 = vdwg.mxu0
        %v988 = vadd.f32 %v593, %v871
        %v989 = vadd.f32 %v598, %v876
        %v990 = vadd.f32 %v603, %v881
        %v991 = vadd.f32 %v608, %v886
        %v992 = vadd.f32 %v613, %v891
        %v993 = vadd.f32 %v618, %v896
        %v994 = vadd.f32 %v623, %v901
        %v995 = vadd.f32 %v628, %v906
        %v997 = vcombine.high %v985, %v985
        %v999 = vunpack.c.l.s4 1966171168
        %v1000 = vunpack.c.0.s8 %v999
        %v1001 = vlaneseq
        %v1002 = vshrl.u32 %v1001, 7
        %v1003 = vsub.s32 %v1000, %v1002
        %v1004 = vrot.slane %v985, %v1003
        %v1006 = vunpack.c.l.s4 1966171168
        %v1007 = vunpack.c.0.s8 %v1006
        %v1008 = vlaneseq
        %v1009 = vshrl.u32 %v1008, 7
        %v1010 = vsub.s32 %v1007, %v1009
        %v1011 = vrot.slane %v997, %v1010
        %v1012 = vcombine.high %v1004, %v1004
        %v1013 = vcombine.high %v1011, %v1011
        %v1015 = vunpack.c.l.s4 1966171168
        %v1016 = vunpack.c.0.s8 %v1015
        %v1017 = vlaneseq
        %v1018 = vshrl.u32 %v1017, 7
        %v1019 = vsub.s32 %v1016, %v1018
        %v1020 = vrot.slane %v1004, %v1019
        %v1022 = vunpack.c.l.s4 1966171168
        %v1023 = vunpack.c.0.s8 %v1022
        %v1024 = vlaneseq
        %v1025 = vshrl.u32 %v1024, 7
        %v1026 = vsub.s32 %v1023, %v1025
        %v1027 = vrot.slane %v1011, %v1026
        %v1029 = vunpack.c.l.s4 1966171168
        %v1030 = vunpack.c.0.s8 %v1029
        %v1031 = vlaneseq
        %v1032 = vshrl.u32 %v1031, 7
        %v1033 = vsub.s32 %v1030, %v1032
        %v1034 = vrot.slane %v1012, %v1033
        %v1036 = vunpack.c.l.s4 1966171168
        %v1037 = vunpack.c.0.s8 %v1036
        %v1038 = vlaneseq
        %v1039 = vshrl.u32 %v1038, 7
        %v1040 = vsub.s32 %v1037, %v1039
        %v1041 = vrot.slane %v1013, %v1040
        %v1042 = vcombine.high %v1020, %v1020
        %v1043 = vcombine.high %v1027, %v1027
        %v1044 = vcombine.high %v1034, %v1034
        %v1045 = vcombine.high %v1041, %v1041
        %v1046 = vlaneseq
        %v1047 = vshrl.u32 %v1046, 7
        %v1048 = vsub.s32 0, %v1047
        %v1049 = vrot.slane %v1020, %v1048
        %v1050 = vlaneseq
        %v1051 = vshrl.u32 %v1050, 7
        %v1052 = vsub.s32 0, %v1051
        %v1053 = vrot.slane %v1034, %v1052
        %v1054 = vlaneseq
        %v1055 = vshrl.u32 %v1054, 7
        %v1056 = vsub.s32 0, %v1055
        %v1057 = vrot.slane %v1042, %v1056
        %v1058 = vlaneseq
        %v1059 = vshrl.u32 %v1058, 7
        %v1060 = vsub.s32 0, %v1059
        %v1061 = vrot.slane %v1044, %v1060
        %v1062 = vlaneseq
        %v1063 = vshrl.u32 %v1062, 7
        %v1064 = vsub.s32 0, %v1063
        %v1065 = vrot.slane %v1027, %v1064
        %v1066 = vlaneseq
        %v1067 = vshrl.u32 %v1066, 7
        %v1068 = vsub.s32 0, %v1067
        %v1069 = vrot.slane %v1041, %v1068
        %v1070 = vlaneseq
        %v1071 = vshrl.u32 %v1070, 7
        %v1072 = vsub.s32 0, %v1071
        %v1073 = vrot.slane %v1043, %v1072
        %v1074 = vlaneseq
        %v1075 = vshrl.u32 %v1074, 7
        %v1076 = vsub.s32 0, %v1075
        %v1077 = vrot.slane %v1045, %v1076
        %v1086 = vadd.f32 %v988, %v1049
        %v1087 = vadd.f32 %v989, %v1053
        %v1088 = vadd.f32 %v990, %v1057
        %v1089 = vadd.f32 %v991, %v1061
        %v1090 = vadd.f32 %v992, %v1065
        %v1091 = vadd.f32 %v993, %v1069
        %v1092 = vadd.f32 %v994, %v1073
        %v1093 = vadd.f32 %v995, %v1077
        %v1094 = vtanh.pop %v1086
        %v1095 = vtanh.pop %v1087
        %v1096 = vtanh.pop %v1088
        %v1097 = vtanh.pop %v1089
        %v1098 = vtanh.pop %v1090
        %v1099 = vtanh.pop %v1091
        %v1100 = vtanh.pop %v1092
        %v1101 = vtanh.pop %v1093
        %v1102 = vld [vmem:[%s9] sm:$0x1]
        %v1104 = vlaneseq
        %v1105 = vshrl.u32 %v1104, 7
        %v1106 = vsub.s32 0, %v1105
        %v1107 = vrot.slane %v1102, %v1106
        %v1109 = vmul.f32 %v1094, %v1107
        %v1110 = vmul.f32 %v1095, %v1107
        %v1111 = vmul.f32 %v1096, %v1107
        %v1112 = vmul.f32 %v1097, %v1107
        %v1113 = vmul.f32 %v1098, %v1107
        %v1114 = vmul.f32 %v1099, %v1107
        %v1115 = vmul.f32 %v1100, %v1107
        %v1116 = vmul.f32 %v1101, %v1107
        %v1117 = vsel %vm501, %v1109, 0.0
        %1118 = vadd.xlane.f32.xlu0 %v1117
        %v1119 = vpop.xlane.xlu0 %1118
        %v1120 = vsel %vm501, %v1110, 0.0
        %1121 = vadd.xlane.f32.xlu0 %v1120
        %v1122 = vpop.xlane.xlu0 %1121
        %v1123 = vsel %vm501, %v1111, 0.0
        %1124 = vadd.xlane.f32.xlu0 %v1123
        %v1125 = vpop.xlane.xlu0 %1124
        %v1126 = vsel %vm501, %v1112, 0.0
        %1127 = vadd.xlane.f32.xlu0 %v1126
        %v1128 = vpop.xlane.xlu0 %1127
        %v1129 = vsel %vm501, %v1113, 0.0
        %1130 = vadd.xlane.f32.xlu0 %v1129
        %v1131 = vpop.xlane.xlu0 %1130
        %v1132 = vsel %vm501, %v1114, 0.0
        %1133 = vadd.xlane.f32.xlu0 %v1132
        %v1134 = vpop.xlane.xlu0 %1133
        %v1135 = vsel %vm501, %v1115, 0.0
        %1136 = vadd.xlane.f32.xlu0 %v1135
        %v1137 = vpop.xlane.xlu0 %1136
        %v1138 = vsel %vm501, %v1116, 0.0
        %1139 = vadd.xlane.f32.xlu0 %v1138
        %v1140 = vpop.xlane.xlu0 %1139
        %v1141 = vld [vmem:[#allocation2] sm:$0x1]
        %v1143 = vlaneseq
        %v1144 = vshrl.u32 %v1143, 7
        %v1145 = vsub.s32 0, %v1144
        %v1146 = vrot.slane %v1141, %v1145
        %1147 = vset.pattern.permute.xlu0 0
        %1148 = vperm.xlu0 %1147, %v1146
        %v1149 = vpop.permute.xlu0 %1148
        %v1151 = vadd.f32 %v1119, %v1149
        %v1152 = vadd.f32 %v1122, %v1149
        %v1153 = vadd.f32 %v1125, %v1149
        %v1154 = vadd.f32 %v1128, %v1149
        %v1155 = vadd.f32 %v1131, %v1149
        %v1156 = vadd.f32 %v1134, %v1149
        %v1157 = vadd.f32 %v1137, %v1149
        %v1158 = vadd.f32 %v1140, %v1149
        %v1159 = vlaneseq
        %v1160 = vand.u32 %v1159, 127
        %v1161 = vld [vmem:[%s478] sm:$0xff]
        %1162 = vset.pattern.permute.xlu0 0
        %1163 = vperm.xlu0 %1162, %v1161
        %v1164 = vpop.permute.xlu0 %1163
        %vm1165 = vcmp.ge.s32.totalorder %v1160, %v1164
        %v1174 = vlaneseq
        %v1175 = vshrl.u32 %v1174, 7
        %v1176 = vsub.s32 %v1160, %v1175
        %v1177 = vrot.slane %v1151, %v1176
        %v1178 = vlaneseq
        %v1179 = vshrl.u32 %v1178, 7
        %v1180 = vsub.s32 %v1160, %v1179
        %v1181 = vrot.slane %v1152, %v1180
        %v1182 = vlaneseq
        %v1183 = vshrl.u32 %v1182, 7
        %v1184 = vsub.s32 %v1160, %v1183
        %v1185 = vrot.slane %v1153, %v1184
        %v1186 = vlaneseq
        %v1187 = vshrl.u32 %v1186, 7
        %v1188 = vsub.s32 %v1160, %v1187
        %v1189 = vrot.slane %v1154, %v1188
        %v1190 = vlaneseq
        %v1191 = vshrl.u32 %v1190, 7
        %v1192 = vsub.s32 %v1160, %v1191
        %v1193 = vrot.slane %v1155, %v1192
        %v1194 = vlaneseq
        %v1195 = vshrl.u32 %v1194, 7
        %v1196 = vsub.s32 %v1160, %v1195
        %v1197 = vrot.slane %v1156, %v1196
        %v1198 = vlaneseq
        %v1199 = vshrl.u32 %v1198, 7
        %v1200 = vsub.s32 %v1160, %v1199
        %v1201 = vrot.slane %v1157, %v1200
        %v1202 = vlaneseq
        %v1203 = vshrl.u32 %v1202, 7
        %v1204 = vsub.s32 %v1160, %v1203
        %v1205 = vrot.slane %v1158, %v1204
        %vm1206 = vcmask 1041409
        %v1207 = vsel %vm1206, %v1181, %v1177
        %vm1208 = vcmask 1042434
        %v1209 = vsel %vm1208, %v1185, %v1207
        %vm1210 = vcmask 1043459
        %v1211 = vsel %vm1210, %v1189, %v1209
        %vm1212 = vcmask 1044484
        %v1213 = vsel %vm1212, %v1193, %v1211
        %vm1214 = vcmask 1045509
        %v1215 = vsel %vm1214, %v1197, %v1213
        %vm1216 = vcmask 1046534
        %v1217 = vsel %vm1216, %v1201, %v1215
        %vm1218 = vcmask 1047559
        %v1219 = vsel %vm1218, %v1205, %v1217
        %v1221 = vsel %vm1165, -1e+30, %v1219
        %v1222 = vmul.f32 %v1221, 2.0
        %vm1223 = vcmask 64512
        %v1224 = vsel %vm1223, %v1222, -inf
        %1225 = vmax.xlane.f32.xlu0 %v1224
        %v1226 = vpop.xlane.xlu0 %1225
        %v1227 = vsub.f32 %v1222, %v1226
        %v1228 = vmul.f32 %v1227, 1.442695
        %v1229 = vpow.pop %v1228
        %v1230 = vsel %vm1223, %v1229, 0.0
        %1231 = vadd.xlane.f32.xlu0 %v1230
        %v1232 = vpop.xlane.xlu0 %1231
        %v1233 = vrcp.pop %v1232
        %v1234 = vmul.f32 %v1232, %v1233
        %v1235 = vsub.f32 2.0, %v1234
        %v1236 = vmul.f32 %v1233, %v1235
        %v1237 = vmul.f32 %v1229, %v1236
        %1238 = vst.msk [vmem:[%s483] sm:$0xff] %vm1223, %v1237
        %v1240 = vcombine.high %v1237, %v1237
        %v1242 = vunpack.c.l.s4 1966171168
        %v1243 = vunpack.c.0.s8 %v1242
        %v1244 = vlaneseq
        %v1245 = vshrl.u32 %v1244, 7
        %v1246 = vsub.s32 %v1243, %v1245
        %v1247 = vrot.slane %v1237, %v1246
        %v1249 = vunpack.c.l.s4 1966171168
        %v1250 = vunpack.c.0.s8 %v1249
        %v1251 = vlaneseq
        %v1252 = vshrl.u32 %v1251, 7
        %v1253 = vsub.s32 %v1250, %v1252
        %v1254 = vrot.slane %v1240, %v1253
        %v1255 = vcombine.high %v1247, %v1247
        %v1256 = vcombine.high %v1254, %v1254
        %v1258 = vunpack.c.l.s4 1966171168
        %v1259 = vunpack.c.0.s8 %v1258
        %v1260 = vlaneseq
        %v1261 = vshrl.u32 %v1260, 7
        %v1262 = vsub.s32 %v1259, %v1261
        %v1263 = vrot.slane %v1247, %v1262
        %v1265 = vunpack.c.l.s4 1966171168
        %v1266 = vunpack.c.0.s8 %v1265
        %v1267 = vlaneseq
        %v1268 = vshrl.u32 %v1267, 7
        %v1269 = vsub.s32 %v1266, %v1268
        %v1270 = vrot.slane %v1254, %v1269
        %v1272 = vunpack.c.l.s4 1966171168
        %v1273 = vunpack.c.0.s8 %v1272
        %v1274 = vlaneseq
        %v1275 = vshrl.u32 %v1274, 7
        %v1276 = vsub.s32 %v1273, %v1275
        %v1277 = vrot.slane %v1255, %v1276
        %v1279 = vunpack.c.l.s4 1966171168
        %v1280 = vunpack.c.0.s8 %v1279
        %v1281 = vlaneseq
        %v1282 = vshrl.u32 %v1281, 7
        %v1283 = vsub.s32 %v1280, %v1282
        %v1284 = vrot.slane %v1256, %v1283
        %v1285 = vcombine.high %v1263, %v1263
        %v1286 = vcombine.high %v1270, %v1270
        %v1287 = vcombine.high %v1277, %v1277
        %v1288 = vcombine.high %v1284, %v1284
        %v1289 = vsel %vm1223, %v1263, 0
        %1291 = vmatprep.subr.mxu0 0.0
        %1292 = vmatpush1.msra.mxu0 0.0
        %1293 = vmatprep.subr.mxu0 0.0
        %1294 = vmatpush1.msra.mxu0 0.0
        %1295 = vmatprep.subr.mxu0 0.0
        %1296 = vmatpush1.msra.mxu0 0.0
        %1297 = vmatprep.subr.mxu0 0.0
        %1298 = vmatpush1.msra.mxu0 0.0
        %1299 = vmatprep.subr.mxu0 0.0
        %1300 = vmatpush1.msra.mxu0 0.0
        %1301 = vmatprep.subr.mxu0 0.0
        %1302 = vmatpush1.msra.mxu0 0.0
        %1303 = vmatprep.subr.mxu0 0.0
        %1304 = vmatpush1.msra.mxu0 0.0
        %1305 = vmatprep.subr.mxu0 0.0
        %1306 = vmatpush1.msra.mxu0 0.0
        %1307 = vmatprep.subr.mxu0 0.0
        %1308 = vmatpush1.msra.mxu0 0.0
        %1309 = vmatprep.subr.mxu0 0.0
        %1310 = vmatpush1.msra.mxu0 0.0
        %1311 = vmatprep.subr.mxu0 0.0
        %1312 = vmatpush1.msra.mxu0 0.0
        %1313 = vmatprep.subr.mxu0 0.0
        %1314 = vmatpush1.msra.mxu0 0.0
        %1315 = vmatprep.subr.mxu0 0.0
        %1316 = vmatpush1.msra.mxu0 0.0
        %1317 = vmatprep.subr.mxu0 0.0
        %1318 = vmatpush1.msra.mxu0 0.0
        %1319 = vmatprep.subr.mxu0 0.0
        %1320 = vmatpush1.msra.mxu0 0.0
        %1321 = vmatprep.subr.mxu0 0.0
        %1322 = vmatpush1.msra.mxu0 %v484
        %1323 = vmatprep.subr.mxu0 0.0
        %1324 = vmatpush2.msra.mxu0 0.0
        %1325 = vmatprep.subr.mxu0 0.0
        %1326 = vmatpush2.msra.mxu0 0.0
        %1327 = vmatprep.subr.mxu0 0.0
        %1328 = vmatpush2.msra.mxu0 0.0
        %1329 = vmatprep.subr.mxu0 0.0
        %1330 = vmatpush2.msra.mxu0 0.0
        %1331 = vmatprep.subr.mxu0 0.0
        %1332 = vmatpush2.msra.mxu0 0.0
        %1333 = vmatprep.subr.mxu0 0.0
        %1334 = vmatpush2.msra.mxu0 0.0
        %1335 = vmatprep.subr.mxu0 0.0
        %1336 = vmatpush2.msra.mxu0 0.0
        %1337 = vmatprep.subr.mxu0 0.0
        %1338 = vmatpush2.msra.mxu0 0.0
        %1339 = vmatprep.subr.mxu0 0.0
        %1340 = vmatpush2.msra.mxu0 0.0
        %1341 = vmatprep.subr.mxu0 0.0
        %1342 = vmatpush2.msra.mxu0 0.0
        %1343 = vmatprep.subr.mxu0 0.0
        %1344 = vmatpush2.msra.mxu0 0.0
        %1345 = vmatprep.subr.mxu0 0.0
        %1346 = vmatpush2.msra.mxu0 0.0
        %1347 = vmatprep.subr.mxu0 0.0
        %1348 = vmatpush2.msra.mxu0 0.0
        %1349 = vmatprep.subr.mxu0 0.0
        %1350 = vmatpush2.msra.mxu0 0.0
        %1351 = vmatprep.subr.mxu0 0.0
        %1352 = vmatpush2.msra.mxu0 0.0
        %1353 = vmatprep.subr.mxu0 0.0
        %1354 = vmatpush2.msra.mxu0 0.0
        %1355 = vmatprep.mubr.f32.mxu0 0.0
        %1356 = vmatmul.mubr.f32.gmra.mxu0 %v1289
        %v1357 = vpop.f32.mrf.mxu0
        %v1358 = vadd.f32 0.0, %v1357
        %v1359 = vpop.f32.mrf.mxu0
        %1360 = vdwg.mxu0
        %v1361 = vsel %vm1223, %v1277, 0
        %1363 = vmatprep.subr.mxu0 0.0
        %1364 = vmatpush1.msra.mxu0 0.0
        %1365 = vmatprep.subr.mxu0 0.0
        %1366 = vmatpush1.msra.mxu0 0.0
        %1367 = vmatprep.subr.mxu0 0.0
        %1368 = vmatpush1.msra.mxu0 0.0
        %1369 = vmatprep.subr.mxu0 0.0
        %1370 = vmatpush1.msra.mxu0 0.0
        %1371 = vmatprep.subr.mxu0 0.0
        %1372 = vmatpush1.msra.mxu0 0.0
        %1373 = vmatprep.subr.mxu0 0.0
        %1374 = vmatpush1.msra.mxu0 0.0
        %1375 = vmatprep.subr.mxu0 0.0
        %1376 = vmatpush1.msra.mxu0 0.0
        %1377 = vmatprep.subr.mxu0 0.0
        %1378 = vmatpush1.msra.mxu0 0.0
        %1379 = vmatprep.subr.mxu0 0.0
        %1380 = vmatpush1.msra.mxu0 0.0
        %1381 = vmatprep.subr.mxu0 0.0
        %1382 = vmatpush1.msra.mxu0 0.0
        %1383 = vmatprep.subr.mxu0 0.0
        %1384 = vmatpush1.msra.mxu0 0.0
        %1385 = vmatprep.subr.mxu0 0.0
        %1386 = vmatpush1.msra.mxu0 0.0
        %1387 = vmatprep.subr.mxu0 0.0
        %1388 = vmatpush1.msra.mxu0 0.0
        %1389 = vmatprep.subr.mxu0 0.0
        %1390 = vmatpush1.msra.mxu0 0.0
        %1391 = vmatprep.subr.mxu0 0.0
        %1392 = vmatpush1.msra.mxu0 0.0
        %1393 = vmatprep.subr.mxu0 0.0
        %1394 = vmatpush1.msra.mxu0 %v485
        %1395 = vmatprep.subr.mxu0 0.0
        %1396 = vmatpush2.msra.mxu0 0.0
        %1397 = vmatprep.subr.mxu0 0.0
        %1398 = vmatpush2.msra.mxu0 0.0
        %1399 = vmatprep.subr.mxu0 0.0
        %1400 = vmatpush2.msra.mxu0 0.0
        %1401 = vmatprep.subr.mxu0 0.0
        %1402 = vmatpush2.msra.mxu0 0.0
        %1403 = vmatprep.subr.mxu0 0.0
        %1404 = vmatpush2.msra.mxu0 0.0
        %1405 = vmatprep.subr.mxu0 0.0
        %1406 = vmatpush2.msra.mxu0 0.0
        %1407 = vmatprep.subr.mxu0 0.0
        %1408 = vmatpush2.msra.mxu0 0.0
        %1409 = vmatprep.subr.mxu0 0.0
        %1410 = vmatpush2.msra.mxu0 0.0
        %1411 = vmatprep.subr.mxu0 0.0
        %1412 = vmatpush2.msra.mxu0 0.0
        %1413 = vmatprep.subr.mxu0 0.0
        %1414 = vmatpush2.msra.mxu0 0.0
        %1415 = vmatprep.subr.mxu0 0.0
        %1416 = vmatpush2.msra.mxu0 0.0
        %1417 = vmatprep.subr.mxu0 0.0
        %1418 = vmatpush2.msra.mxu0 0.0
        %1419 = vmatprep.subr.mxu0 0.0
        %1420 = vmatpush2.msra.mxu0 0.0
        %1421 = vmatprep.subr.mxu0 0.0
        %1422 = vmatpush2.msra.mxu0 0.0
        %1423 = vmatprep.subr.mxu0 0.0
        %1424 = vmatpush2.msra.mxu0 0.0
        %1425 = vmatprep.subr.mxu0 0.0
        %1426 = vmatpush2.msra.mxu0 0.0
        %1427 = vmatprep.mubr.f32.mxu0 0.0
        %1428 = vmatmul.mubr.f32.gmra.mxu0 %v1361
        %v1429 = vpop.f32.mrf.mxu0
        %v1430 = vadd.f32 0.0, %v1429
        %v1431 = vpop.f32.mrf.mxu0
        %1432 = vdwg.mxu0
        %v1433 = vsel %vm1223, %v1285, 0
        %1435 = vmatprep.subr.mxu0 0.0
        %1436 = vmatpush1.msra.mxu0 0.0
        %1437 = vmatprep.subr.mxu0 0.0
        %1438 = vmatpush1.msra.mxu0 0.0
        %1439 = vmatprep.subr.mxu0 0.0
        %1440 = vmatpush1.msra.mxu0 0.0
        %1441 = vmatprep.subr.mxu0 0.0
        %1442 = vmatpush1.msra.mxu0 0.0
        %1443 = vmatprep.subr.mxu0 0.0
        %1444 = vmatpush1.msra.mxu0 0.0
        %1445 = vmatprep.subr.mxu0 0.0
        %1446 = vmatpush1.msra.mxu0 0.0
        %1447 = vmatprep.subr.mxu0 0.0
        %1448 = vmatpush1.msra.mxu0 0.0
        %1449 = vmatprep.subr.mxu0 0.0
        %1450 = vmatpush1.msra.mxu0 0.0
        %1451 = vmatprep.subr.mxu0 0.0
        %1452 = vmatpush1.msra.mxu0 0.0
        %1453 = vmatprep.subr.mxu0 0.0
        %1454 = vmatpush1.msra.mxu0 0.0
        %1455 = vmatprep.subr.mxu0 0.0
        %1456 = vmatpush1.msra.mxu0 0.0
        %1457 = vmatprep.subr.mxu0 0.0
        %1458 = vmatpush1.msra.mxu0 0.0
        %1459 = vmatprep.subr.mxu0 0.0
        %1460 = vmatpush1.msra.mxu0 0.0
        %1461 = vmatprep.subr.mxu0 0.0
        %1462 = vmatpush1.msra.mxu0 0.0
        %1463 = vmatprep.subr.mxu0 0.0
        %1464 = vmatpush1.msra.mxu0 0.0
        %1465 = vmatprep.subr.mxu0 0.0
        %1466 = vmatpush1.msra.mxu0 %v486
        %1467 = vmatprep.subr.mxu0 0.0
        %1468 = vmatpush2.msra.mxu0 0.0
        %1469 = vmatprep.subr.mxu0 0.0
        %1470 = vmatpush2.msra.mxu0 0.0
        %1471 = vmatprep.subr.mxu0 0.0
        %1472 = vmatpush2.msra.mxu0 0.0
        %1473 = vmatprep.subr.mxu0 0.0
        %1474 = vmatpush2.msra.mxu0 0.0
        %1475 = vmatprep.subr.mxu0 0.0
        %1476 = vmatpush2.msra.mxu0 0.0
        %1477 = vmatprep.subr.mxu0 0.0
        %1478 = vmatpush2.msra.mxu0 0.0
        %1479 = vmatprep.subr.mxu0 0.0
        %1480 = vmatpush2.msra.mxu0 0.0
        %1481 = vmatprep.subr.mxu0 0.0
        %1482 = vmatpush2.msra.mxu0 0.0
        %1483 = vmatprep.subr.mxu0 0.0
        %1484 = vmatpush2.msra.mxu0 0.0
        %1485 = vmatprep.subr.mxu0 0.0
        %1486 = vmatpush2.msra.mxu0 0.0
        %1487 = vmatprep.subr.mxu0 0.0
        %1488 = vmatpush2.msra.mxu0 0.0
        %1489 = vmatprep.subr.mxu0 0.0
        %1490 = vmatpush2.msra.mxu0 0.0
        %1491 = vmatprep.subr.mxu0 0.0
        %1492 = vmatpush2.msra.mxu0 0.0
        %1493 = vmatprep.subr.mxu0 0.0
        %1494 = vmatpush2.msra.mxu0 0.0
        %1495 = vmatprep.subr.mxu0 0.0
        %1496 = vmatpush2.msra.mxu0 0.0
        %1497 = vmatprep.subr.mxu0 0.0
        %1498 = vmatpush2.msra.mxu0 0.0
        %1499 = vmatprep.mubr.f32.mxu0 0.0
        %1500 = vmatmul.mubr.f32.gmra.mxu0 %v1433
        %v1501 = vpop.f32.mrf.mxu0
        %v1502 = vadd.f32 0.0, %v1501
        %v1503 = vpop.f32.mrf.mxu0
        %1504 = vdwg.mxu0
        %v1505 = vsel %vm1223, %v1287, 0
        %1507 = vmatprep.subr.mxu0 0.0
        %1508 = vmatpush1.msra.mxu0 0.0
        %1509 = vmatprep.subr.mxu0 0.0
        %1510 = vmatpush1.msra.mxu0 0.0
        %1511 = vmatprep.subr.mxu0 0.0
        %1512 = vmatpush1.msra.mxu0 0.0
        %1513 = vmatprep.subr.mxu0 0.0
        %1514 = vmatpush1.msra.mxu0 0.0
        %1515 = vmatprep.subr.mxu0 0.0
        %1516 = vmatpush1.msra.mxu0 0.0
        %1517 = vmatprep.subr.mxu0 0.0
        %1518 = vmatpush1.msra.mxu0 0.0
        %1519 = vmatprep.subr.mxu0 0.0
        %1520 = vmatpush1.msra.mxu0 0.0
        %1521 = vmatprep.subr.mxu0 0.0
        %1522 = vmatpush1.msra.mxu0 0.0
        %1523 = vmatprep.subr.mxu0 0.0
        %1524 = vmatpush1.msra.mxu0 0.0
        %1525 = vmatprep.subr.mxu0 0.0
        %1526 = vmatpush1.msra.mxu0 0.0
        %1527 = vmatprep.subr.mxu0 0.0
        %1528 = vmatpush1.msra.mxu0 0.0
        %1529 = vmatprep.subr.mxu0 0.0
        %1530 = vmatpush1.msra.mxu0 0.0
        %1531 = vmatprep.subr.mxu0 0.0
        %1532 = vmatpush1.msra.mxu0 0.0
        %1533 = vmatprep.subr.mxu0 0.0
        %1534 = vmatpush1.msra.mxu0 0.0
        %1535 = vmatprep.subr.mxu0 0.0
        %1536 = vmatpush1.msra.mxu0 0.0
        %1537 = vmatprep.subr.mxu0 0.0
        %1538 = vmatpush1.msra.mxu0 %v487
        %1539 = vmatprep.subr.mxu0 0.0
        %1540 = vmatpush2.msra.mxu0 0.0
        %1541 = vmatprep.subr.mxu0 0.0
        %1542 = vmatpush2.msra.mxu0 0.0
        %1543 = vmatprep.subr.mxu0 0.0
        %1544 = vmatpush2.msra.mxu0 0.0
        %1545 = vmatprep.subr.mxu0 0.0
        %1546 = vmatpush2.msra.mxu0 0.0
        %1547 = vmatprep.subr.mxu0 0.0
        %1548 = vmatpush2.msra.mxu0 0.0
        %1549 = vmatprep.subr.mxu0 0.0
        %1550 = vmatpush2.msra.mxu0 0.0
        %1551 = vmatprep.subr.mxu0 0.0
        %1552 = vmatpush2.msra.mxu0 0.0
        %1553 = vmatprep.subr.mxu0 0.0
        %1554 = vmatpush2.msra.mxu0 0.0
        %1555 = vmatprep.subr.mxu0 0.0
        %1556 = vmatpush2.msra.mxu0 0.0
        %1557 = vmatprep.subr.mxu0 0.0
        %1558 = vmatpush2.msra.mxu0 0.0
        %1559 = vmatprep.subr.mxu0 0.0
        %1560 = vmatpush2.msra.mxu0 0.0
        %1561 = vmatprep.subr.mxu0 0.0
        %1562 = vmatpush2.msra.mxu0 0.0
        %1563 = vmatprep.subr.mxu0 0.0
        %1564 = vmatpush2.msra.mxu0 0.0
        %1565 = vmatprep.subr.mxu0 0.0
        %1566 = vmatpush2.msra.mxu0 0.0
        %1567 = vmatprep.subr.mxu0 0.0
        %1568 = vmatpush2.msra.mxu0 0.0
        %1569 = vmatprep.subr.mxu0 0.0
        %1570 = vmatpush2.msra.mxu0 0.0
        %1571 = vmatprep.mubr.f32.mxu0 0.0
        %1572 = vmatmul.mubr.f32.gmra.mxu0 %v1505
        %v1573 = vpop.f32.mrf.mxu0
        %v1574 = vadd.f32 0.0, %v1573
        %v1575 = vpop.f32.mrf.mxu0
        %1576 = vdwg.mxu0
        %v1577 = vsel %vm1223, %v1270, 0
        %1579 = vmatprep.subr.mxu0 0.0
        %1580 = vmatpush1.msra.mxu0 0.0
        %1581 = vmatprep.subr.mxu0 0.0
        %1582 = vmatpush1.msra.mxu0 0.0
        %1583 = vmatprep.subr.mxu0 0.0
        %1584 = vmatpush1.msra.mxu0 0.0
        %1585 = vmatprep.subr.mxu0 0.0
        %1586 = vmatpush1.msra.mxu0 0.0
        %1587 = vmatprep.subr.mxu0 0.0
        %1588 = vmatpush1.msra.mxu0 0.0
        %1589 = vmatprep.subr.mxu0 0.0
        %1590 = vmatpush1.msra.mxu0 0.0
        %1591 = vmatprep.subr.mxu0 0.0
        %1592 = vmatpush1.msra.mxu0 0.0
        %1593 = vmatprep.subr.mxu0 0.0
        %1594 = vmatpush1.msra.mxu0 0.0
        %1595 = vmatprep.subr.mxu0 0.0
        %1596 = vmatpush1.msra.mxu0 0.0
        %1597 = vmatprep.subr.mxu0 0.0
        %1598 = vmatpush1.msra.mxu0 0.0
        %1599 = vmatprep.subr.mxu0 0.0
        %1600 = vmatpush1.msra.mxu0 0.0
        %1601 = vmatprep.subr.mxu0 0.0
        %1602 = vmatpush1.msra.mxu0 0.0
        %1603 = vmatprep.subr.mxu0 0.0
        %1604 = vmatpush1.msra.mxu0 0.0
        %1605 = vmatprep.subr.mxu0 0.0
        %1606 = vmatpush1.msra.mxu0 0.0
        %1607 = vmatprep.subr.mxu0 0.0
        %1608 = vmatpush1.msra.mxu0 0.0
        %1609 = vmatprep.subr.mxu0 0.0
        %1610 = vmatpush1.msra.mxu0 %v488
        %1611 = vmatprep.subr.mxu0 0.0
        %1612 = vmatpush2.msra.mxu0 0.0
        %1613 = vmatprep.subr.mxu0 0.0
        %1614 = vmatpush2.msra.mxu0 0.0
        %1615 = vmatprep.subr.mxu0 0.0
        %1616 = vmatpush2.msra.mxu0 0.0
        %1617 = vmatprep.subr.mxu0 0.0
        %1618 = vmatpush2.msra.mxu0 0.0
        %1619 = vmatprep.subr.mxu0 0.0
        %1620 = vmatpush2.msra.mxu0 0.0
        %1621 = vmatprep.subr.mxu0 0.0
        %1622 = vmatpush2.msra.mxu0 0.0
        %1623 = vmatprep.subr.mxu0 0.0
        %1624 = vmatpush2.msra.mxu0 0.0
        %1625 = vmatprep.subr.mxu0 0.0
        %1626 = vmatpush2.msra.mxu0 0.0
        %1627 = vmatprep.subr.mxu0 0.0
        %1628 = vmatpush2.msra.mxu0 0.0
        %1629 = vmatprep.subr.mxu0 0.0
        %1630 = vmatpush2.msra.mxu0 0.0
        %1631 = vmatprep.subr.mxu0 0.0
        %1632 = vmatpush2.msra.mxu0 0.0
        %1633 = vmatprep.subr.mxu0 0.0
        %1634 = vmatpush2.msra.mxu0 0.0
        %1635 = vmatprep.subr.mxu0 0.0
        %1636 = vmatpush2.msra.mxu0 0.0
        %1637 = vmatprep.subr.mxu0 0.0
        %1638 = vmatpush2.msra.mxu0 0.0
        %1639 = vmatprep.subr.mxu0 0.0
        %1640 = vmatpush2.msra.mxu0 0.0
        %1641 = vmatprep.subr.mxu0 0.0
        %1642 = vmatpush2.msra.mxu0 0.0
        %1643 = vmatprep.mubr.f32.mxu0 0.0
        %1644 = vmatmul.mubr.f32.gmra.mxu0 %v1577
        %v1645 = vpop.f32.mrf.mxu0
        %v1646 = vadd.f32 0.0, %v1645
        %v1647 = vpop.f32.mrf.mxu0
        %1648 = vdwg.mxu0
        %v1649 = vsel %vm1223, %v1284, 0
        %1651 = vmatprep.subr.mxu0 0.0
        %1652 = vmatpush1.msra.mxu0 0.0
        %1653 = vmatprep.subr.mxu0 0.0
        %1654 = vmatpush1.msra.mxu0 0.0
        %1655 = vmatprep.subr.mxu0 0.0
        %1656 = vmatpush1.msra.mxu0 0.0
        %1657 = vmatprep.subr.mxu0 0.0
        %1658 = vmatpush1.msra.mxu0 0.0
        %1659 = vmatprep.subr.mxu0 0.0
        %1660 = vmatpush1.msra.mxu0 0.0
        %1661 = vmatprep.subr.mxu0 0.0
        %1662 = vmatpush1.msra.mxu0 0.0
        %1663 = vmatprep.subr.mxu0 0.0
        %1664 = vmatpush1.msra.mxu0 0.0
        %1665 = vmatprep.subr.mxu0 0.0
        %1666 = vmatpush1.msra.mxu0 0.0
        %1667 = vmatprep.subr.mxu0 0.0
        %1668 = vmatpush1.msra.mxu0 0.0
        %1669 = vmatprep.subr.mxu0 0.0
        %1670 = vmatpush1.msra.mxu0 0.0
        %1671 = vmatprep.subr.mxu0 0.0
        %1672 = vmatpush1.msra.mxu0 0.0
        %1673 = vmatprep.subr.mxu0 0.0
        %1674 = vmatpush1.msra.mxu0 0.0
        %1675 = vmatprep.subr.mxu0 0.0
        %1676 = vmatpush1.msra.mxu0 0.0
        %1677 = vmatprep.subr.mxu0 0.0
        %1678 = vmatpush1.msra.mxu0 0.0
        %1679 = vmatprep.subr.mxu0 0.0
        %1680 = vmatpush1.msra.mxu0 0.0
        %1681 = vmatprep.subr.mxu0 0.0
        %1682 = vmatpush1.msra.mxu0 %v489
        %1683 = vmatprep.subr.mxu0 0.0
        %1684 = vmatpush2.msra.mxu0 0.0
        %1685 = vmatprep.subr.mxu0 0.0
        %1686 = vmatpush2.msra.mxu0 0.0
        %1687 = vmatprep.subr.mxu0 0.0
        %1688 = vmatpush2.msra.mxu0 0.0
        %1689 = vmatprep.subr.mxu0 0.0
        %1690 = vmatpush2.msra.mxu0 0.0
        %1691 = vmatprep.subr.mxu0 0.0
        %1692 = vmatpush2.msra.mxu0 0.0
        %1693 = vmatprep.subr.mxu0 0.0
        %1694 = vmatpush2.msra.mxu0 0.0
        %1695 = vmatprep.subr.mxu0 0.0
        %1696 = vmatpush2.msra.mxu0 0.0
        %1697 = vmatprep.subr.mxu0 0.0
        %1698 = vmatpush2.msra.mxu0 0.0
        %1699 = vmatprep.subr.mxu0 0.0
        %1700 = vmatpush2.msra.mxu0 0.0
        %1701 = vmatprep.subr.mxu0 0.0
        %1702 = vmatpush2.msra.mxu0 0.0
        %1703 = vmatprep.subr.mxu0 0.0
        %1704 = vmatpush2.msra.mxu0 0.0
        %1705 = vmatprep.subr.mxu0 0.0
        %1706 = vmatpush2.msra.mxu0 0.0
        %1707 = vmatprep.subr.mxu0 0.0
        %1708 = vmatpush2.msra.mxu0 0.0
        %1709 = vmatprep.subr.mxu0 0.0
        %1710 = vmatpush2.msra.mxu0 0.0
        %1711 = vmatprep.subr.mxu0 0.0
        %1712 = vmatpush2.msra.mxu0 0.0
        %1713 = vmatprep.subr.mxu0 0.0
        %1714 = vmatpush2.msra.mxu0 0.0
        %1715 = vmatprep.mubr.f32.mxu0 0.0
        %1716 = vmatmul.mubr.f32.gmra.mxu0 %v1649
        %v1717 = vpop.f32.mrf.mxu0
        %v1718 = vadd.f32 0.0, %v1717
        %v1719 = vpop.f32.mrf.mxu0
        %1720 = vdwg.mxu0
        %v1721 = vsel %vm1223, %v1286, 0
        %1723 = vmatprep.subr.mxu0 0.0
        %1724 = vmatpush1.msra.mxu0 0.0
        %1725 = vmatprep.subr.mxu0 0.0
        %1726 = vmatpush1.msra.mxu0 0.0
        %1727 = vmatprep.subr.mxu0 0.0
        %1728 = vmatpush1.msra.mxu0 0.0
        %1729 = vmatprep.subr.mxu0 0.0
        %1730 = vmatpush1.msra.mxu0 0.0
        %1731 = vmatprep.subr.mxu0 0.0
        %1732 = vmatpush1.msra.mxu0 0.0
        %1733 = vmatprep.subr.mxu0 0.0
        %1734 = vmatpush1.msra.mxu0 0.0
        %1735 = vmatprep.subr.mxu0 0.0
        %1736 = vmatpush1.msra.mxu0 0.0
        %1737 = vmatprep.subr.mxu0 0.0
        %1738 = vmatpush1.msra.mxu0 0.0
        %1739 = vmatprep.subr.mxu0 0.0
        %1740 = vmatpush1.msra.mxu0 0.0
        %1741 = vmatprep.subr.mxu0 0.0
        %1742 = vmatpush1.msra.mxu0 0.0
        %1743 = vmatprep.subr.mxu0 0.0
        %1744 = vmatpush1.msra.mxu0 0.0
        %1745 = vmatprep.subr.mxu0 0.0
        %1746 = vmatpush1.msra.mxu0 0.0
        %1747 = vmatprep.subr.mxu0 0.0
        %1748 = vmatpush1.msra.mxu0 0.0
        %1749 = vmatprep.subr.mxu0 0.0
        %1750 = vmatpush1.msra.mxu0 0.0
        %1751 = vmatprep.subr.mxu0 0.0
        %1752 = vmatpush1.msra.mxu0 0.0
        %1753 = vmatprep.subr.mxu0 0.0
        %1754 = vmatpush1.msra.mxu0 %v490
        %1755 = vmatprep.subr.mxu0 0.0
        %1756 = vmatpush2.msra.mxu0 0.0
        %1757 = vmatprep.subr.mxu0 0.0
        %1758 = vmatpush2.msra.mxu0 0.0
        %1759 = vmatprep.subr.mxu0 0.0
        %1760 = vmatpush2.msra.mxu0 0.0
        %1761 = vmatprep.subr.mxu0 0.0
        %1762 = vmatpush2.msra.mxu0 0.0
        %1763 = vmatprep.subr.mxu0 0.0
        %1764 = vmatpush2.msra.mxu0 0.0
        %1765 = vmatprep.subr.mxu0 0.0
        %1766 = vmatpush2.msra.mxu0 0.0
        %1767 = vmatprep.subr.mxu0 0.0
        %1768 = vmatpush2.msra.mxu0 0.0
        %1769 = vmatprep.subr.mxu0 0.0
        %1770 = vmatpush2.msra.mxu0 0.0
        %1771 = vmatprep.subr.mxu0 0.0
        %1772 = vmatpush2.msra.mxu0 0.0
        %1773 = vmatprep.subr.mxu0 0.0
        %1774 = vmatpush2.msra.mxu0 0.0
        %1775 = vmatprep.subr.mxu0 0.0
        %1776 = vmatpush2.msra.mxu0 0.0
        %1777 = vmatprep.subr.mxu0 0.0
        %1778 = vmatpush2.msra.mxu0 0.0
        %1779 = vmatprep.subr.mxu0 0.0
        %1780 = vmatpush2.msra.mxu0 0.0
        %1781 = vmatprep.subr.mxu0 0.0
        %1782 = vmatpush2.msra.mxu0 0.0
        %1783 = vmatprep.subr.mxu0 0.0
        %1784 = vmatpush2.msra.mxu0 0.0
        %1785 = vmatprep.subr.mxu0 0.0
        %1786 = vmatpush2.msra.mxu0 0.0
        %1787 = vmatprep.mubr.f32.mxu0 0.0
        %1788 = vmatmul.mubr.f32.gmra.mxu0 %v1721
        %v1789 = vpop.f32.mrf.mxu0
        %v1790 = vadd.f32 0.0, %v1789
        %v1791 = vpop.f32.mrf.mxu0
        %1792 = vdwg.mxu0
        %v1793 = vsel %vm1223, %v1288, 0
        %1795 = vmatprep.subr.mxu0 0.0
        %1796 = vmatpush1.msra.mxu0 0.0
        %1797 = vmatprep.subr.mxu0 0.0
        %1798 = vmatpush1.msra.mxu0 0.0
        %1799 = vmatprep.subr.mxu0 0.0
        %1800 = vmatpush1.msra.mxu0 0.0
        %1801 = vmatprep.subr.mxu0 0.0
        %1802 = vmatpush1.msra.mxu0 0.0
        %1803 = vmatprep.subr.mxu0 0.0
        %1804 = vmatpush1.msra.mxu0 0.0
        %1805 = vmatprep.subr.mxu0 0.0
        %1806 = vmatpush1.msra.mxu0 0.0
        %1807 = vmatprep.subr.mxu0 0.0
        %1808 = vmatpush1.msra.mxu0 0.0
        %1809 = vmatprep.subr.mxu0 0.0
        %1810 = vmatpush1.msra.mxu0 0.0
        %1811 = vmatprep.subr.mxu0 0.0
        %1812 = vmatpush1.msra.mxu0 0.0
        %1813 = vmatprep.subr.mxu0 0.0
        %1814 = vmatpush1.msra.mxu0 0.0
        %1815 = vmatprep.subr.mxu0 0.0
        %1816 = vmatpush1.msra.mxu0 0.0
        %1817 = vmatprep.subr.mxu0 0.0
        %1818 = vmatpush1.msra.mxu0 0.0
        %1819 = vmatprep.subr.mxu0 0.0
        %1820 = vmatpush1.msra.mxu0 0.0
        %1821 = vmatprep.subr.mxu0 0.0
        %1822 = vmatpush1.msra.mxu0 0.0
        %1823 = vmatprep.subr.mxu0 0.0
        %1824 = vmatpush1.msra.mxu0 0.0
        %1825 = vmatprep.subr.mxu0 0.0
        %1826 = vmatpush1.msra.mxu0 %v491
        %1827 = vmatprep.subr.mxu0 0.0
        %1828 = vmatpush2.msra.mxu0 0.0
        %1829 = vmatprep.subr.mxu0 0.0
        %1830 = vmatpush2.msra.mxu0 0.0
        %1831 = vmatprep.subr.mxu0 0.0
        %1832 = vmatpush2.msra.mxu0 0.0
        %1833 = vmatprep.subr.mxu0 0.0
        %1834 = vmatpush2.msra.mxu0 0.0
        %1835 = vmatprep.subr.mxu0 0.0
        %1836 = vmatpush2.msra.mxu0 0.0
        %1837 = vmatprep.subr.mxu0 0.0
        %1838 = vmatpush2.msra.mxu0 0.0
        %1839 = vmatprep.subr.mxu0 0.0
        %1840 = vmatpush2.msra.mxu0 0.0
        %1841 = vmatprep.subr.mxu0 0.0
        %1842 = vmatpush2.msra.mxu0 0.0
        %1843 = vmatprep.subr.mxu0 0.0
        %1844 = vmatpush2.msra.mxu0 0.0
        %1845 = vmatprep.subr.mxu0 0.0
        %1846 = vmatpush2.msra.mxu0 0.0
        %1847 = vmatprep.subr.mxu0 0.0
        %1848 = vmatpush2.msra.mxu0 0.0
        %1849 = vmatprep.subr.mxu0 0.0
        %1850 = vmatpush2.msra.mxu0 0.0
        %1851 = vmatprep.subr.mxu0 0.0
        %1852 = vmatpush2.msra.mxu0 0.0
        %1853 = vmatprep.subr.mxu0 0.0
        %1854 = vmatpush2.msra.mxu0 0.0
        %1855 = vmatprep.subr.mxu0 0.0
        %1856 = vmatpush2.msra.mxu0 0.0
        %1857 = vmatprep.subr.mxu0 0.0
        %1858 = vmatpush2.msra.mxu0 0.0
        %1859 = vmatprep.mubr.f32.mxu0 0.0
        %1860 = vmatmul.mubr.f32.gmra.mxu0 %v1793
        %v1861 = vpop.f32.mrf.mxu0
        %v1862 = vadd.f32 0.0, %v1861
        %v1863 = vpop.f32.mrf.mxu0
        %1864 = vdwg.mxu0
        %vm1865 = vcmask 122880
        %1866 = vst.msk [vmem:[%s452] sm:$0x1] %vm1865, %v1358
        %1867 = vst.msk [vmem:[%s452 + $0x1] sm:$0x1] %vm1865, %v1430
        %1868 = vst.msk [vmem:[%s452 + $0x2] sm:$0x1] %vm1865, %v1502
        %1869 = vst.msk [vmem:[%s452 + $0x3] sm:$0x1] %vm1865, %v1574
        %1870 = vst.msk [vmem:[%s452 + $0x4] sm:$0x1] %vm1865, %v1646
        %1871 = vst.msk [vmem:[%s452 + $0x5] sm:$0x1] %vm1865, %v1718
        %1872 = vst.msk [vmem:[%s452 + $0x6] sm:$0x1] %vm1865, %v1790
        %1873 = vst.msk [vmem:[%s452 + $0x7] sm:$0x1] %vm1865, %v1862
        %s1874 = sand.u32 %s288, 1
        %s1875 = scalar_lea.sflag [#allocation4], %s1874
        %s1876 = sand.u32 %s288, 1
        %s1877 = smul.addr %s1876, 8
        %s1878 = scalar_lea.vmem [#allocation3], %s1877
        %p1879 = scmp.lt.s32.totalorder %s29, 1
        %s1880 = scalar_select %p1879, %s29, 1
        %s1881 = smul.addr %s1880, 8
        %s1882 = scalar_lea.vmem %s12, %s1881
        // Predicated region
        $region65: #{tpu_custom_call.1} parent=63 // pred_check
          %p1883 = pneg %p298
        $region66: #{tpu_custom_call.1} parent=63 // pred_check_branch
          %1885 = sbr.rel (%p1883) target = $region68
        $region67: #{tpu_custom_call.1} parent=63 // pred_region
          %s1886 = smul.u32 8, %s29
          %s1888 = ssub.s32 128, 128
          %1889 = vsyncadd %s1875, %s1888
          %s1890 = smul.addr %s1886, 16
          %s1891 = scalar_lea.hbm %s11, %s1890
          %s1892 = sshll.u32 %s1878, 4
          %s1893 = int_to_ptr.vmem [resolvable:$true] %s1892
          %1898 = dma.vmem_to_hbm [thread:$0]  %s1893, 128, %s1891, %s1875, 16, 16, 1
        $region68: #{tpu_custom_call.1} parent=63 // pred_fallthru
          _
        // Predicated region
        $region69: #{tpu_custom_call.1} parent=63 // pred_check
          %p1899 = pneg %p324
        $region70: #{tpu_custom_call.1} parent=63 // pred_check_branch
          %1901 = sbr.rel (%p1899) target = $region72
        $region71: #{tpu_custom_call.1} parent=63 // pred_region
          _
        $region72: #{tpu_custom_call.1} parent=63 // pred_fallthru
          _
      $region64: #{tpu_custom_call.1} parent=5 // pred_fallthru
        _
      %p1902 = scmp.le.s32.totalorder 2, %s24
      // Predicated region
      $region73: #{tpu_custom_call.1} parent=5 // pred_check
        %p1903 = pneg %p1902
      $region74: #{tpu_custom_call.1} parent=5 // pred_check_branch
        %1905 = sbr.rel (%p1903) target = $region76
      $region75: #{tpu_custom_call.1} parent=5 // pred_region
        %s1906 = ssub.s32 %s24, 2
        // Predicated region
        $region77: #{tpu_custom_call.1} parent=75 // pred_check
          %p1907 = pneg %p304
        $region78: #{tpu_custom_call.1} parent=75 // pred_check_branch
          %1909 = sbr.rel (%p1907) target = $region80
        $region79: #{tpu_custom_call.1} parent=75 // pred_region
          %s1910 = sand.u32 %s289, 1
          %s1911 = scalar_lea.sflag [#allocation4], %s1910
          %s1912 = sand.u32 %s289, 1
          %s1913 = smul.addr %s1912, 8
          %s1914 = scalar_lea.vmem [#allocation3], %s1913
          %1915 = dma.done %s1911, 128
        $region80: #{tpu_custom_call.1} parent=75 // pred_fallthru
          _
        // Predicated region
        $region81: #{tpu_custom_call.1} parent=75 // pred_check
          %p1916 = pneg %p330
        $region82: #{tpu_custom_call.1} parent=75 // pred_check_branch
          %1918 = sbr.rel (%p1916) target = $region84
        $region83: #{tpu_custom_call.1} parent=75 // pred_region
          %p1919 = scmp.lt.s32.totalorder %s30, 1
          %s1920 = scalar_select %p1919, %s30, 1
          %s1921 = smul.addr %s1920, 8
          %s1922 = scalar_lea.vmem %s12, %s1921
        $region84: #{tpu_custom_call.1} parent=75 // pred_fallthru
          _
      $region76: #{tpu_custom_call.1} parent=5 // pred_fallthru
        _
    $region6: #{tpu_custom_call.1} parent=1 // loop_footer
      %s28 = sadd.s32 1, %s24
    $region7: #{tpu_custom_call.1} parent=1 // loop_footer_branch
      %23 = sbr.rel target = $region3
    $region8: #{tpu_custom_call.1} parent=1 // loop_exit
      _
    %1923 = vsyncpa [#allocation4], 1
    %s1924 = scalar_lea.sflag [#allocation4], 1
    %1925 = vsyncpa %s1924, 1

</llo_original>
